<compile_context>
chip_gen: v7x
topology: tpu7x:2x2x1
jax: 0.10.0
libtpu: 0.0.40
codegen_flags: <defaults>
</compile_context>

<pallas_src>
import functools

import jax
import jax.numpy as jnp
from jax import lax
from jax.experimental import pallas as pl
from jax.experimental.pallas import tpu as pltpu


def _triplet_attention_kernel(x_ref, w_ref, o_ref, col_ref,
                              *, K, H, W, pad, lpad, nb_per_step):
    # x_ref  : (Nb, Cp, HWe)      channel-padded, lane-aligned flat-extended input
    # w_ref  : (2*Cp, K*K*Cp)     rows [0:Cp] = 7x7 conv (im2col layout),
    #                             rows [Cp:2Cp] = 1x1 conv at the centre-tap block
    # o_ref  : (Nb, Cp, H*W)      output
    # col_ref: (K*K*Cp, Nb*H*W)   VMEM scratch: im2col matrix
    HW = H * W
    Cp = o_ref.shape[1]
    HWe = x_ref.shape[2]

    # Hoisted column-within-row index over the full extended flat axis.
    ww = (lax.broadcasted_iota(jnp.int32, (1, HWe), 1) - lpad) % W

    # --- im2col: per-dx source pre-masking + static lane-shifted slices -------
    # (no per-tap row/col masks: out-of-row reads hit the zero extensions,
    #  column wrap-around reads hit the pre-zeroed source columns)
    for nb in range(nb_per_step):
        xe = x_ref[nb]                                   # (Cp, HWe)
        for dx in range(-pad, pad + 1):
            if dx == 0:
                xm = xe                                  # no column wrap possible
            elif dx > 0:
                xm = jnp.where(ww >= dx, xe, 0)          # zero source cols [0, dx)
            else:
                xm = jnp.where(ww < W + dx, xe, 0)       # zero source cols [W+dx, W)
            for dy in range(-pad, pad + 1):
                t = (dy + pad) * K + (dx + pad)
                start = lpad + dy * W + dx               # static lane offset
                col_ref[t * Cp:(t + 1) * Cp, nb * HW:(nb + 1) * HW] = (
                    xm[:, start:start + HW])

    # --- one fused MXU matmul: 7x7 conv (rows 0:Cp) + 1x1 conv (rows Cp:2Cp) --
    # Operands keep their input dtype (bf16 stays bf16 on v6e/v7x); f32 accum.
    res = jnp.dot(w_ref[...], col_ref[...],
                  preferred_element_type=jnp.float32)    # (2*Cp, Nb*HW)

    # --- f32 elementwise epilogue (v5e-safe) ----------------------------------
    for nb in range(nb_per_step):
        sp = res[0:Cp, nb * HW:(nb + 1) * HW]
        ch = res[Cp:2 * Cp, nb * HW:(nb + 1) * HW]
        xc = x_ref[nb][:, lpad:lpad + HW]                # lane-aligned centre window
        gate = jax.nn.sigmoid(sp) * jax.nn.sigmoid(ch)
        o_ref[nb] = (xc.astype(jnp.float32) * gate).astype(o_ref.dtype)


def triplet_attention(x_nchw, w_spatial, w_channel, *, kernel_size=7):
    """x_nchw: (N, C, H, W); w_spatial: (C, C, K, K); w_channel: (C, C, 1, 1)."""
    N, C, H, W = x_nchw.shape
    K = kernel_size
    pad = (K - 1) // 2
    HW = H * W
    # TODO(synk): generalize to H*W not a multiple of 128 (needs padded lanes +
    # masked stores); fine for the tested 16x16 spatial size.
    assert HW % 128 == 0, "lane-dense layout assumes H*W is a multiple of 128"

    M = pad * W + pad                      # max |flat tap offset|
    Cp = ((C + 7) // 8) * 8                # channels padded to a sublane tile
    KK = K * K
    dtype = x_nchw.dtype

    # Lane-aligned flat extensions: left pad rounded up to a multiple of 128 so
    # the centre window starts on a vreg boundary; total width multiple of 128.
    lpad = ((M + 127) // 128) * 128
    HWe = ((lpad + HW + M + 127) // 128) * 128
    rpad = HWe - lpad - HW

    # Batch several images per grid step (amortize ~0.35 us/step overhead),
    # keeping >= 2 steps so the batch axis still splits across v7x's 2 TCs.
    num_steps = 2 if N >= 2 else 1
    nb_per_step = (N + num_steps - 1) // num_steps
    n_total = num_steps * nb_per_step

    # (N, C, H, W) -> (N, C, H*W) is a free contiguous reshape (no transpose).
    x_flat = x_nchw.reshape(N, C, HW)
    x_ext = jnp.pad(x_flat,
                    ((0, n_total - N), (0, Cp - C), (lpad, rpad)))  # (Np, Cp, HWe)

    # Combined weight: rows [0:Cp] = 7x7 conv in im2col layout (col index
    # (ky*K+kx)*Cp + ci), rows [Cp:2Cp] = 1x1 conv placed only in the
    # centre-tap column block -> both gates from one matmul.
    ws = jnp.transpose(w_spatial, (0, 2, 3, 1))                     # (co, ky, kx, ci)
    ws = jnp.pad(ws, ((0, Cp - C), (0, 0), (0, 0), (0, Cp - C)))
    ws_p = ws.reshape(Cp, KK * Cp)
    wc_p = jnp.pad(w_channel[:, :, 0, 0], ((0, Cp - C), (0, Cp - C)))
    t_center = pad * K + pad
    w_comb = jnp.zeros((2 * Cp, KK * Cp), dtype)
    w_comb = w_comb.at[0:Cp, :].set(ws_p.astype(dtype))
    w_comb = w_comb.at[Cp:2 * Cp,
                       t_center * Cp:(t_center + 1) * Cp].set(wc_p.astype(dtype))

    # Accurate VMEM budget (double-buffered I/O + weight, col scratch, f32 res).
    itemsize = jnp.dtype(dtype).itemsize
    vmem_bytes = (2 * nb_per_step * Cp * HWe * itemsize
                  + 2 * nb_per_step * Cp * HW * itemsize
                  + 2 * 2 * Cp * KK * Cp * itemsize
                  + KK * Cp * nb_per_step * HW * itemsize
                  + 2 * Cp * nb_per_step * HW * 4)
    vmem_limit = int(max(2 * vmem_bytes, 4 * 1024 * 1024))

    out_p = pl.pallas_call(
        functools.partial(_triplet_attention_kernel, K=K, H=H, W=W, pad=pad,
                          lpad=lpad, nb_per_step=nb_per_step),
        out_shape=jax.ShapeDtypeStruct((n_total, Cp, HW), dtype),
        grid_spec=pltpu.PrefetchScalarGridSpec(
            num_scalar_prefetch=0,
            grid=(num_steps,),
            in_specs=[
                pl.BlockSpec((nb_per_step, Cp, HWe), lambda n: (n, 0, 0)),
                pl.BlockSpec((2 * Cp, KK * Cp), lambda n: (0, 0)),
            ],
            out_specs=pl.BlockSpec((nb_per_step, Cp, HW), lambda n: (n, 0, 0)),
            scratch_shapes=[pltpu.VMEM((KK * Cp, nb_per_step * HW), dtype)],
        ),
        compiler_params=pltpu.CompilerParams(
            dimension_semantics=("parallel",),      # batch axis -> 2 TCs on v7x
            vmem_limit_bytes=vmem_limit,
        ),
    )(x_ext, w_comb)

    # Drop padded batch/channels; (N, C, H*W) -> (N, C, H, W) is a free reshape.
    return out_p[:N, :C, :].reshape(N, C, H, W)


def _reference(x_nchw, w_spatial, w_channel, *, kernel_size=7):
    """Pure-JAX reference (matches torch.nn.Conv2d semantics, NCHW, bias=False)."""
    pad = (kernel_size - 1) // 2
    dn = lax.conv_dimension_numbers(x_nchw.shape, w_spatial.shape,
                                    ("NCHW", "OIHW", "NCHW"))
    sp = lax.conv_general_dilated(x_nchw, w_spatial, (1, 1),
                                  [(pad, pad), (pad, pad)], dimension_numbers=dn)
    ch = lax.conv_general_dilated(x_nchw, w_channel, (1, 1),
                                  [(0, 0), (0, 0)], dimension_numbers=dn)
    return x_nchw * jax.nn.sigmoid(sp) * jax.nn.sigmoid(ch)


if __name__ == "__main__":
    N, C, H, W = 2, 4, 16, 16
    KSIZE = 7

    key = jax.random.PRNGKey(0)
    kx, kws, kwc = jax.random.split(key, 3)

    x = jax.random.normal(kx, (N, C, H, W), dtype=jnp.float32)
    # Deterministic synthetic weights matching nn.Conv2d shapes (bias=False).
    w_spatial = (jax.random.normal(kws, (C, C, KSIZE, KSIZE), dtype=jnp.float32)
                 * (1.0 / (C * KSIZE * KSIZE) ** 0.5))
    w_channel = (jax.random.normal(kwc, (C, C, 1, 1), dtype=jnp.float32)
                 * (1.0 / C ** 0.5))

    out = triplet_attention(x, w_spatial, w_channel, kernel_size=KSIZE)
    out = jax.block_until_ready(out)

    ref = jax.block_until_ready(_reference(x, w_spatial, w_channel,
                                           kernel_size=KSIZE))
    assert out.shape == (N, C, H, W)
    max_err = float(jnp.max(jnp.abs(out - ref)))
    assert jnp.allclose(out, ref, atol=1e-3, rtol=1e-3), max_err

    print("KERNEL_OK")
</pallas_src>

<mosaic_0001>
module attributes {stable_mosaic.version = 11 : i64} {
  func.func @_triplet_attention_kernel(%arg0: i32, %arg1: memref<1x8x512xf32, #tpu.memory_space<vmem>>, %arg2: memref<16x392xf32, #tpu.memory_space<vmem>>, %arg3: memref<1x8x256xf32, #tpu.memory_space<vmem>>, %arg4: memref<392x256xf32, #tpu.memory_space<vmem>>) attributes {dimension_semantics = [#tpu.dimension_semantics<parallel>], iteration_bounds = array<i64: 2>, scalar_prefetch = 0 : i64, scratch_operands = 1 : i64, tpu.core_type = #tpu.core_type<tc>, window_params = [{transform_indices = @transform_0, window_bounds = array<i64: 1, 8, 512>}, {pipeline_mode = #tpu.pipeline_mode<synchronous>, transform_indices = @transform_1, window_bounds = array<i64: 16, 392>}, {transform_indices = @transform_2, window_bounds = array<i64: 1, 8, 256>}]} {
    %0 = tpu.iota {dimensions = array<i32: 1>} : vector<1x512xi32>
    %c128_i32 = arith.constant 128 : i32
    %1 = vector.broadcast %c128_i32 : i32 to vector<1x512xi32>
    %2 = arith.subi %0, %1 : vector<1x512xi32>
    %c16_i32 = arith.constant 16 : i32
    %c0_i32 = arith.constant 0 : i32
    %3 = arith.cmpi eq, %c16_i32, %c0_i32 : i32
    %c1_i32 = arith.constant 1 : i32
    %4 = arith.select %3, %c1_i32, %c16_i32 : i32
    %5 = vector.broadcast %4 : i32 to vector<1x512xi32>
    %6 = arith.remsi %2, %5 : vector<1x512xi32>
    %c0_i32_0 = arith.constant 0 : i32
    %7 = vector.broadcast %c0_i32_0 : i32 to vector<1x512xi32>
    %8 = arith.cmpi ne, %6, %7 : vector<1x512xi32>
    %c0_i32_1 = arith.constant 0 : i32
    %9 = vector.broadcast %c0_i32_1 : i32 to vector<1x512xi32>
    %10 = arith.cmpi slt, %6, %9 : vector<1x512xi32>
    %c0_i32_2 = arith.constant 0 : i32
    %11 = arith.cmpi slt, %4, %c0_i32_2 : i32
    %12 = vector.broadcast %11 : i1 to vector<1x512xi1>
    %13 = vector.broadcast %12 : vector<1x512xi1> to vector<1x512xi1>
    %14 = arith.xori %10, %13 : vector<1x512xi1>
    %15 = arith.andi %14, %8 : vector<1x512xi1>
    %16 = vector.broadcast %4 : i32 to vector<1x512xi32>
    %17 = arith.addi %6, %16 : vector<1x512xi32>
    %18 = arith.select %15, %17, %6 : vector<1x512xi1>, vector<1x512xi32>
    %c0 = arith.constant 0 : index
    %c0_3 = arith.constant 0 : index
    %c0_4 = arith.constant 0 : index
    %19 = vector.load %arg1[%c0, %c0_3, %c0_4] : memref<1x8x512xf32, #tpu.memory_space<vmem>>, vector<1x8x512xf32>
    %20 = vector.shape_cast %19 : vector<1x8x512xf32> to vector<8x512xf32>
    %c13_i32 = arith.constant 13 : i32
    %21 = vector.broadcast %c13_i32 : i32 to vector<1x512xi32>
    %22 = arith.cmpi slt, %18, %21 : vector<1x512xi32>
    %c0_i32_5 = arith.constant 0 : i32
    %23 = arith.sitofp %c0_i32_5 : i32 to f32
    %24 = vector.shape_cast %22 : vector<1x512xi1> to vector<1x512xi1>
    %25 = vector.broadcast %24 : vector<1x512xi1> to vector<8x512xi1>
    %26 = vector.broadcast %23 : f32 to vector<8x512xf32>
    %27 = arith.select %25, %20, %26 : vector<8x512xi1>, vector<8x512xf32>
    %28 = vector.extract_strided_slice %27 {offsets = [0, 77], sizes = [8, 256], strides = [1, 1]} : vector<8x512xf32> to vector<8x256xf32>
    %c0_6 = arith.constant 0 : index
    %c0_7 = arith.constant 0 : index
    %29 = vector.load %arg4[%c0_6, %c0_7] : memref<392x256xf32, #tpu.memory_space<vmem>>, vector<8x256xf32>
    tpu.vector_store %arg4[%c0_6, %c0_7], %28 {strides = array<i32>} : memref<392x256xf32, #tpu.memory_space<vmem>>, vector<8x256xf32>,
    %30 = vector.extract_strided_slice %27 {offsets = [0, 93], sizes = [8, 256], strides = [1, 1]} : vector<8x512xf32> to vector<8x256xf32>
    %c56 = arith.constant 56 : index
    %c0_8 = arith.constant 0 : index
    %31 = vector.load %arg4[%c56, %c0_8] : memref<392x256xf32, #tpu.memory_space<vmem>>, vector<8x256xf32>
    tpu.vector_store %arg4[%c56, %c0_8], %30 {strides = array<i32>} : memref<392x256xf32, #tpu.memory_space<vmem>>, vector<8x256xf32>,
    %32 = vector.extract_strided_slice %27 {offsets = [0, 109], sizes = [8, 256], strides = [1, 1]} : vector<8x512xf32> to vector<8x256xf32>
    %c112 = arith.constant 112 : index
    %c0_9 = arith.constant 0 : index
    %33 = vector.load %arg4[%c112, %c0_9] : memref<392x256xf32, #tpu.memory_space<vmem>>, vector<8x256xf32>
    tpu.vector_store %arg4[%c112, %c0_9], %32 {strides = array<i32>} : memref<392x256xf32, #tpu.memory_space<vmem>>, vector<8x256xf32>,
    %34 = vector.extract_strided_slice %27 {offsets = [0, 125], sizes = [8, 256], strides = [1, 1]} : vector<8x512xf32> to vector<8x256xf32>
    %c168 = arith.constant 168 : index
    %c0_10 = arith.constant 0 : index
    %35 = vector.load %arg4[%c168, %c0_10] : memref<392x256xf32, #tpu.memory_space<vmem>>, vector<8x256xf32>
    tpu.vector_store %arg4[%c168, %c0_10], %34 {strides = array<i32>} : memref<392x256xf32, #tpu.memory_space<vmem>>, vector<8x256xf32>,
    %36 = vector.extract_strided_slice %27 {offsets = [0, 141], sizes = [8, 256], strides = [1, 1]} : vector<8x512xf32> to vector<8x256xf32>
    %c224 = arith.constant 224 : index
    %c0_11 = arith.constant 0 : index
    %37 = vector.load %arg4[%c224, %c0_11] : memref<392x256xf32, #tpu.memory_space<vmem>>, vector<8x256xf32>
    tpu.vector_store %arg4[%c224, %c0_11], %36 {strides = array<i32>} : memref<392x256xf32, #tpu.memory_space<vmem>>, vector<8x256xf32>,
    %38 = vector.extract_strided_slice %27 {offsets = [0, 157], sizes = [8, 256], strides = [1, 1]} : vector<8x512xf32> to vector<8x256xf32>
    %c280 = arith.constant 280 : index
    %c0_12 = arith.constant 0 : index
    %39 = vector.load %arg4[%c280, %c0_12] : memref<392x256xf32, #tpu.memory_space<vmem>>, vector<8x256xf32>
    tpu.vector_store %arg4[%c280, %c0_12], %38 {strides = array<i32>} : memref<392x256xf32, #tpu.memory_space<vmem>>, vector<8x256xf32>,
    %40 = vector.extract_strided_slice %27 {offsets = [0, 173], sizes = [8, 256], strides = [1, 1]} : vector<8x512xf32> to vector<8x256xf32>
    %c336 = arith.constant 336 : index
    %c0_13 = arith.constant 0 : index
    %41 = vector.load %arg4[%c336, %c0_13] : memref<392x256xf32, #tpu.memory_space<vmem>>, vector<8x256xf32>
    tpu.vector_store %arg4[%c336, %c0_13], %40 {strides = array<i32>} : memref<392x256xf32, #tpu.memory_space<vmem>>, vector<8x256xf32>,
    %c14_i32 = arith.constant 14 : i32
    %42 = vector.broadcast %c14_i32 : i32 to vector<1x512xi32>
    %43 = arith.cmpi slt, %18, %42 : vector<1x512xi32>
    %c0_i32_14 = arith.constant 0 : i32
    %44 = arith.sitofp %c0_i32_14 : i32 to f32
    %45 = vector.shape_cast %43 : vector<1x512xi1> to vector<1x512xi1>
    %46 = vector.broadcast %45 : vector<1x512xi1> to vector<8x512xi1>
    %47 = vector.broadcast %44 : f32 to vector<8x512xf32>
    %48 = arith.select %46, %20, %47 : vector<8x512xi1>, vector<8x512xf32>
    %49 = vector.extract_strided_slice %48 {offsets = [0, 78], sizes = [8, 256], strides = [1, 1]} : vector<8x512xf32> to vector<8x256xf32>
    %c8 = arith.constant 8 : index
    %c0_15 = arith.constant 0 : index
    %50 = vector.load %arg4[%c8, %c0_15] : memref<392x256xf32, #tpu.memory_space<vmem>>, vector<8x256xf32>
    tpu.vector_store %arg4[%c8, %c0_15], %49 {strides = array<i32>} : memref<392x256xf32, #tpu.memory_space<vmem>>, vector<8x256xf32>,
    %51 = vector.extract_strided_slice %48 {offsets = [0, 94], sizes = [8, 256], strides = [1, 1]} : vector<8x512xf32> to vector<8x256xf32>
    %c64 = arith.constant 64 : index
    %c0_16 = arith.constant 0 : index
    %52 = vector.load %arg4[%c64, %c0_16] : memref<392x256xf32, #tpu.memory_space<vmem>>, vector<8x256xf32>
    tpu.vector_store %arg4[%c64, %c0_16], %51 {strides = array<i32>} : memref<392x256xf32, #tpu.memory_space<vmem>>, vector<8x256xf32>,
    %53 = vector.extract_strided_slice %48 {offsets = [0, 110], sizes = [8, 256], strides = [1, 1]} : vector<8x512xf32> to vector<8x256xf32>
    %c120 = arith.constant 120 : index
    %c0_17 = arith.constant 0 : index
    %54 = vector.load %arg4[%c120, %c0_17] : memref<392x256xf32, #tpu.memory_space<vmem>>, vector<8x256xf32>
    tpu.vector_store %arg4[%c120, %c0_17], %53 {strides = array<i32>} : memref<392x256xf32, #tpu.memory_space<vmem>>, vector<8x256xf32>,
    %55 = vector.extract_strided_slice %48 {offsets = [0, 126], sizes = [8, 256], strides = [1, 1]} : vector<8x512xf32> to vector<8x256xf32>
    %c176 = arith.constant 176 : index
    %c0_18 = arith.constant 0 : index
    %56 = vector.load %arg4[%c176, %c0_18] : memref<392x256xf32, #tpu.memory_space<vmem>>, vector<8x256xf32>
    tpu.vector_store %arg4[%c176, %c0_18], %55 {strides = array<i32>} : memref<392x256xf32, #tpu.memory_space<vmem>>, vector<8x256xf32>,
    %57 = vector.extract_strided_slice %48 {offsets = [0, 142], sizes = [8, 256], strides = [1, 1]} : vector<8x512xf32> to vector<8x256xf32>
    %c232 = arith.constant 232 : index
    %c0_19 = arith.constant 0 : index
    %58 = vector.load %arg4[%c232, %c0_19] : memref<392x256xf32, #tpu.memory_space<vmem>>, vector<8x256xf32>
    tpu.vector_store %arg4[%c232, %c0_19], %57 {strides = array<i32>} : memref<392x256xf32, #tpu.memory_space<vmem>>, vector<8x256xf32>,
    %59 = vector.extract_strided_slice %48 {offsets = [0, 158], sizes = [8, 256], strides = [1, 1]} : vector<8x512xf32> to vector<8x256xf32>
    %c288 = arith.constant 288 : index
    %c0_20 = arith.constant 0 : index
    %60 = vector.load %arg4[%c288, %c0_20] : memref<392x256xf32, #tpu.memory_space<vmem>>, vector<8x256xf32>
    tpu.vector_store %arg4[%c288, %c0_20], %59 {strides = array<i32>} : memref<392x256xf32, #tpu.memory_space<vmem>>, vector<8x256xf32>,
    %61 = vector.extract_strided_slice %48 {offsets = [0, 174], sizes = [8, 256], strides = [1, 1]} : vector<8x512xf32> to vector<8x256xf32>
    %c344 = arith.constant 344 : index
    %c0_21 = arith.constant 0 : index
    %62 = vector.load %arg4[%c344, %c0_21] : memref<392x256xf32, #tpu.memory_space<vmem>>, vector<8x256xf32>
    tpu.vector_store %arg4[%c344, %c0_21], %61 {strides = array<i32>} : memref<392x256xf32, #tpu.memory_space<vmem>>, vector<8x256xf32>,
    %c15_i32 = arith.constant 15 : i32
    %63 = vector.broadcast %c15_i32 : i32 to vector<1x512xi32>
    %64 = arith.cmpi slt, %18, %63 : vector<1x512xi32>
    %c0_i32_22 = arith.constant 0 : i32
    %65 = arith.sitofp %c0_i32_22 : i32 to f32
    %66 = vector.shape_cast %64 : vector<1x512xi1> to vector<1x512xi1>
    %67 = vector.broadcast %66 : vector<1x512xi1> to vector<8x512xi1>
    %68 = vector.broadcast %65 : f32 to vector<8x512xf32>
    %69 = arith.select %67, %20, %68 : vector<8x512xi1>, vector<8x512xf32>
    %70 = vector.extract_strided_slice %69 {offsets = [0, 79], sizes = [8, 256], strides = [1, 1]} : vector<8x512xf32> to vector<8x256xf32>
    %c16 = arith.constant 16 : index
    %c0_23 = arith.constant 0 : index
    %71 = vector.load %arg4[%c16, %c0_23] : memref<392x256xf32, #tpu.memory_space<vmem>>, vector<8x256xf32>
    tpu.vector_store %arg4[%c16, %c0_23], %70 {strides = array<i32>} : memref<392x256xf32, #tpu.memory_space<vmem>>, vector<8x256xf32>,
    %72 = vector.extract_strided_slice %69 {offsets = [0, 95], sizes = [8, 256], strides = [1, 1]} : vector<8x512xf32> to vector<8x256xf32>
    %c72 = arith.constant 72 : index
    %c0_24 = arith.constant 0 : index
    %73 = vector.load %arg4[%c72, %c0_24] : memref<392x256xf32, #tpu.memory_space<vmem>>, vector<8x256xf32>
    tpu.vector_store %arg4[%c72, %c0_24], %72 {strides = array<i32>} : memref<392x256xf32, #tpu.memory_space<vmem>>, vector<8x256xf32>,
    %74 = vector.extract_strided_slice %69 {offsets = [0, 111], sizes = [8, 256], strides = [1, 1]} : vector<8x512xf32> to vector<8x256xf32>
    %c128 = arith.constant 128 : index
    %c0_25 = arith.constant 0 : index
    %75 = vector.load %arg4[%c128, %c0_25] : memref<392x256xf32, #tpu.memory_space<vmem>>, vector<8x256xf32>
    tpu.vector_store %arg4[%c128, %c0_25], %74 {strides = array<i32>} : memref<392x256xf32, #tpu.memory_space<vmem>>, vector<8x256xf32>,
    %76 = vector.extract_strided_slice %69 {offsets = [0, 127], sizes = [8, 256], strides = [1, 1]} : vector<8x512xf32> to vector<8x256xf32>
    %c184 = arith.constant 184 : index
    %c0_26 = arith.constant 0 : index
    %77 = vector.load %arg4[%c184, %c0_26] : memref<392x256xf32, #tpu.memory_space<vmem>>, vector<8x256xf32>
    tpu.vector_store %arg4[%c184, %c0_26], %76 {strides = array<i32>} : memref<392x256xf32, #tpu.memory_space<vmem>>, vector<8x256xf32>,
    %78 = vector.extract_strided_slice %69 {offsets = [0, 143], sizes = [8, 256], strides = [1, 1]} : vector<8x512xf32> to vector<8x256xf32>
    %c240 = arith.constant 240 : index
    %c0_27 = arith.constant 0 : index
    %79 = vector.load %arg4[%c240, %c0_27] : memref<392x256xf32, #tpu.memory_space<vmem>>, vector<8x256xf32>
    tpu.vector_store %arg4[%c240, %c0_27], %78 {strides = array<i32>} : memref<392x256xf32, #tpu.memory_space<vmem>>, vector<8x256xf32>,
    %80 = vector.extract_strided_slice %69 {offsets = [0, 159], sizes = [8, 256], strides = [1, 1]} : vector<8x512xf32> to vector<8x256xf32>
    %c296 = arith.constant 296 : index
    %c0_28 = arith.constant 0 : index
    %81 = vector.load %arg4[%c296, %c0_28] : memref<392x256xf32, #tpu.memory_space<vmem>>, vector<8x256xf32>
    tpu.vector_store %arg4[%c296, %c0_28], %80 {strides = array<i32>} : memref<392x256xf32, #tpu.memory_space<vmem>>, vector<8x256xf32>,
    %82 = vector.extract_strided_slice %69 {offsets = [0, 175], sizes = [8, 256], strides = [1, 1]} : vector<8x512xf32> to vector<8x256xf32>
    %c352 = arith.constant 352 : index
    %c0_29 = arith.constant 0 : index
    %83 = vector.load %arg4[%c352, %c0_29] : memref<392x256xf32, #tpu.memory_space<vmem>>, vector<8x256xf32>
    tpu.vector_store %arg4[%c352, %c0_29], %82 {strides = array<i32>} : memref<392x256xf32, #tpu.memory_space<vmem>>, vector<8x256xf32>,
    %84 = vector.extract_strided_slice %20 {offsets = [0, 80], sizes = [8, 256], strides = [1, 1]} : vector<8x512xf32> to vector<8x256xf32>
    %c24 = arith.constant 24 : index
    %c0_30 = arith.constant 0 : index
    %85 = vector.load %arg4[%c24, %c0_30] : memref<392x256xf32, #tpu.memory_space<vmem>>, vector<8x256xf32>
    tpu.vector_store %arg4[%c24, %c0_30], %84 {strides = array<i32>} : memref<392x256xf32, #tpu.memory_space<vmem>>, vector<8x256xf32>,
    %86 = vector.extract_strided_slice %20 {offsets = [0, 96], sizes = [8, 256], strides = [1, 1]} : vector<8x512xf32> to vector<8x256xf32>
    %c80 = arith.constant 80 : index
    %c0_31 = arith.constant 0 : index
    %87 = vector.load %arg4[%c80, %c0_31] : memref<392x256xf32, #tpu.memory_space<vmem>>, vector<8x256xf32>
    tpu.vector_store %arg4[%c80, %c0_31], %86 {strides = array<i32>} : memref<392x256xf32, #tpu.memory_space<vmem>>, vector<8x256xf32>,
    %88 = vector.extract_strided_slice %20 {offsets = [0, 112], sizes = [8, 256], strides = [1, 1]} : vector<8x512xf32> to vector<8x256xf32>
    %c136 = arith.constant 136 : index
    %c0_32 = arith.constant 0 : index
    %89 = vector.load %arg4[%c136, %c0_32] : memref<392x256xf32, #tpu.memory_space<vmem>>, vector<8x256xf32>
    tpu.vector_store %arg4[%c136, %c0_32], %88 {strides = array<i32>} : memref<392x256xf32, #tpu.memory_space<vmem>>, vector<8x256xf32>,
    %90 = vector.extract_strided_slice %20 {offsets = [0, 128], sizes = [8, 256], strides = [1, 1]} : vector<8x512xf32> to vector<8x256xf32>
    %c192 = arith.constant 192 : index
    %c0_33 = arith.constant 0 : index
    %91 = vector.load %arg4[%c192, %c0_33] : memref<392x256xf32, #tpu.memory_space<vmem>>, vector<8x256xf32>
    tpu.vector_store %arg4[%c192, %c0_33], %90 {strides = array<i32>} : memref<392x256xf32, #tpu.memory_space<vmem>>, vector<8x256xf32>,
    %92 = vector.extract_strided_slice %20 {offsets = [0, 144], sizes = [8, 256], strides = [1, 1]} : vector<8x512xf32> to vector<8x256xf32>
    %c248 = arith.constant 248 : index
    %c0_34 = arith.constant 0 : index
    %93 = vector.load %arg4[%c248, %c0_34] : memref<392x256xf32, #tpu.memory_space<vmem>>, vector<8x256xf32>
    tpu.vector_store %arg4[%c248, %c0_34], %92 {strides = array<i32>} : memref<392x256xf32, #tpu.memory_space<vmem>>, vector<8x256xf32>,
    %94 = vector.extract_strided_slice %20 {offsets = [0, 160], sizes = [8, 256], strides = [1, 1]} : vector<8x512xf32> to vector<8x256xf32>
    %c304 = arith.constant 304 : index
    %c0_35 = arith.constant 0 : index
    %95 = vector.load %arg4[%c304, %c0_35] : memref<392x256xf32, #tpu.memory_space<vmem>>, vector<8x256xf32>
    tpu.vector_store %arg4[%c304, %c0_35], %94 {strides = array<i32>} : memref<392x256xf32, #tpu.memory_space<vmem>>, vector<8x256xf32>,
    %96 = vector.extract_strided_slice %20 {offsets = [0, 176], sizes = [8, 256], strides = [1, 1]} : vector<8x512xf32> to vector<8x256xf32>
    %c360 = arith.constant 360 : index
    %c0_36 = arith.constant 0 : index
    %97 = vector.load %arg4[%c360, %c0_36] : memref<392x256xf32, #tpu.memory_space<vmem>>, vector<8x256xf32>
    tpu.vector_store %arg4[%c360, %c0_36], %96 {strides = array<i32>} : memref<392x256xf32, #tpu.memory_space<vmem>>, vector<8x256xf32>,
    %c1_i32_37 = arith.constant 1 : i32
    %98 = vector.broadcast %c1_i32_37 : i32 to vector<1x512xi32>
    %99 = arith.cmpi sge, %18, %98 : vector<1x512xi32>
    %c0_i32_38 = arith.constant 0 : i32
    %100 = arith.sitofp %c0_i32_38 : i32 to f32
    %101 = vector.shape_cast %99 : vector<1x512xi1> to vector<1x512xi1>
    %102 = vector.broadcast %101 : vector<1x512xi1> to vector<8x512xi1>
    %103 = vector.broadcast %100 : f32 to vector<8x512xf32>
    %104 = arith.select %102, %20, %103 : vector<8x512xi1>, vector<8x512xf32>
    %105 = vector.extract_strided_slice %104 {offsets = [0, 81], sizes = [8, 256], strides = [1, 1]} : vector<8x512xf32> to vector<8x256xf32>
    %c32 = arith.constant 32 : index
    %c0_39 = arith.constant 0 : index
    %106 = vector.load %arg4[%c32, %c0_39] : memref<392x256xf32, #tpu.memory_space<vmem>>, vector<8x256xf32>
    tpu.vector_store %arg4[%c32, %c0_39], %105 {strides = array<i32>} : memref<392x256xf32, #tpu.memory_space<vmem>>, vector<8x256xf32>,
    %107 = vector.extract_strided_slice %104 {offsets = [0, 97], sizes = [8, 256], strides = [1, 1]} : vector<8x512xf32> to vector<8x256xf32>
    %c88 = arith.constant 88 : index
    %c0_40 = arith.constant 0 : index
    %108 = vector.load %arg4[%c88, %c0_40] : memref<392x256xf32, #tpu.memory_space<vmem>>, vector<8x256xf32>
    tpu.vector_store %arg4[%c88, %c0_40], %107 {strides = array<i32>} : memref<392x256xf32, #tpu.memory_space<vmem>>, vector<8x256xf32>,
    %109 = vector.extract_strided_slice %104 {offsets = [0, 113], sizes = [8, 256], strides = [1, 1]} : vector<8x512xf32> to vector<8x256xf32>
    %c144 = arith.constant 144 : index
    %c0_41 = arith.constant 0 : index
    %110 = vector.load %arg4[%c144, %c0_41] : memref<392x256xf32, #tpu.memory_space<vmem>>, vector<8x256xf32>
    tpu.vector_store %arg4[%c144, %c0_41], %109 {strides = array<i32>} : memref<392x256xf32, #tpu.memory_space<vmem>>, vector<8x256xf32>,
    %111 = vector.extract_strided_slice %104 {offsets = [0, 129], sizes = [8, 256], strides = [1, 1]} : vector<8x512xf32> to vector<8x256xf32>
    %c200 = arith.constant 200 : index
    %c0_42 = arith.constant 0 : index
    %112 = vector.load %arg4[%c200, %c0_42] : memref<392x256xf32, #tpu.memory_space<vmem>>, vector<8x256xf32>
    tpu.vector_store %arg4[%c200, %c0_42], %111 {strides = array<i32>} : memref<392x256xf32, #tpu.memory_space<vmem>>, vector<8x256xf32>,
    %113 = vector.extract_strided_slice %104 {offsets = [0, 145], sizes = [8, 256], strides = [1, 1]} : vector<8x512xf32> to vector<8x256xf32>
    %c256 = arith.constant 256 : index
    %c0_43 = arith.constant 0 : index
    %114 = vector.load %arg4[%c256, %c0_43] : memref<392x256xf32, #tpu.memory_space<vmem>>, vector<8x256xf32>
    tpu.vector_store %arg4[%c256, %c0_43], %113 {strides = array<i32>} : memref<392x256xf32, #tpu.memory_space<vmem>>, vector<8x256xf32>,
    %115 = vector.extract_strided_slice %104 {offsets = [0, 161], sizes = [8, 256], strides = [1, 1]} : vector<8x512xf32> to vector<8x256xf32>
    %c312 = arith.constant 312 : index
    %c0_44 = arith.constant 0 : index
    %116 = vector.load %arg4[%c312, %c0_44] : memref<392x256xf32, #tpu.memory_space<vmem>>, vector<8x256xf32>
    tpu.vector_store %arg4[%c312, %c0_44], %115 {strides = array<i32>} : memref<392x256xf32, #tpu.memory_space<vmem>>, vector<8x256xf32>,
    %117 = vector.extract_strided_slice %104 {offsets = [0, 177], sizes = [8, 256], strides = [1, 1]} : vector<8x512xf32> to vector<8x256xf32>
    %c368 = arith.constant 368 : index
    %c0_45 = arith.constant 0 : index
    %118 = vector.load %arg4[%c368, %c0_45] : memref<392x256xf32, #tpu.memory_space<vmem>>, vector<8x256xf32>
    tpu.vector_store %arg4[%c368, %c0_45], %117 {strides = array<i32>} : memref<392x256xf32, #tpu.memory_space<vmem>>, vector<8x256xf32>,
    %c2_i32 = arith.constant 2 : i32
    %119 = vector.broadcast %c2_i32 : i32 to vector<1x512xi32>
    %120 = arith.cmpi sge, %18, %119 : vector<1x512xi32>
    %c0_i32_46 = arith.constant 0 : i32
    %121 = arith.sitofp %c0_i32_46 : i32 to f32
    %122 = vector.shape_cast %120 : vector<1x512xi1> to vector<1x512xi1>
    %123 = vector.broadcast %122 : vector<1x512xi1> to vector<8x512xi1>
    %124 = vector.broadcast %121 : f32 to vector<8x512xf32>
    %125 = arith.select %123, %20, %124 : vector<8x512xi1>, vector<8x512xf32>
    %126 = vector.extract_strided_slice %125 {offsets = [0, 82], sizes = [8, 256], strides = [1, 1]} : vector<8x512xf32> to vector<8x256xf32>
    %c40 = arith.constant 40 : index
    %c0_47 = arith.constant 0 : index
    %127 = vector.load %arg4[%c40, %c0_47] : memref<392x256xf32, #tpu.memory_space<vmem>>, vector<8x256xf32>
    tpu.vector_store %arg4[%c40, %c0_47], %126 {strides = array<i32>} : memref<392x256xf32, #tpu.memory_space<vmem>>, vector<8x256xf32>,
    %128 = vector.extract_strided_slice %125 {offsets = [0, 98], sizes = [8, 256], strides = [1, 1]} : vector<8x512xf32> to vector<8x256xf32>
    %c96 = arith.constant 96 : index
    %c0_48 = arith.constant 0 : index
    %129 = vector.load %arg4[%c96, %c0_48] : memref<392x256xf32, #tpu.memory_space<vmem>>, vector<8x256xf32>
    tpu.vector_store %arg4[%c96, %c0_48], %128 {strides = array<i32>} : memref<392x256xf32, #tpu.memory_space<vmem>>, vector<8x256xf32>,
    %130 = vector.extract_strided_slice %125 {offsets = [0, 114], sizes = [8, 256], strides = [1, 1]} : vector<8x512xf32> to vector<8x256xf32>
    %c152 = arith.constant 152 : index
    %c0_49 = arith.constant 0 : index
    %131 = vector.load %arg4[%c152, %c0_49] : memref<392x256xf32, #tpu.memory_space<vmem>>, vector<8x256xf32>
    tpu.vector_store %arg4[%c152, %c0_49], %130 {strides = array<i32>} : memref<392x256xf32, #tpu.memory_space<vmem>>, vector<8x256xf32>,
    %132 = vector.extract_strided_slice %125 {offsets = [0, 130], sizes = [8, 256], strides = [1, 1]} : vector<8x512xf32> to vector<8x256xf32>
    %c208 = arith.constant 208 : index
    %c0_50 = arith.constant 0 : index
    %133 = vector.load %arg4[%c208, %c0_50] : memref<392x256xf32, #tpu.memory_space<vmem>>, vector<8x256xf32>
    tpu.vector_store %arg4[%c208, %c0_50], %132 {strides = array<i32>} : memref<392x256xf32, #tpu.memory_space<vmem>>, vector<8x256xf32>,
    %134 = vector.extract_strided_slice %125 {offsets = [0, 146], sizes = [8, 256], strides = [1, 1]} : vector<8x512xf32> to vector<8x256xf32>
    %c264 = arith.constant 264 : index
    %c0_51 = arith.constant 0 : index
    %135 = vector.load %arg4[%c264, %c0_51] : memref<392x256xf32, #tpu.memory_space<vmem>>, vector<8x256xf32>
    tpu.vector_store %arg4[%c264, %c0_51], %134 {strides = array<i32>} : memref<392x256xf32, #tpu.memory_space<vmem>>, vector<8x256xf32>,
    %136 = vector.extract_strided_slice %125 {offsets = [0, 162], sizes = [8, 256], strides = [1, 1]} : vector<8x512xf32> to vector<8x256xf32>
    %c320 = arith.constant 320 : index
    %c0_52 = arith.constant 0 : index
    %137 = vector.load %arg4[%c320, %c0_52] : memref<392x256xf32, #tpu.memory_space<vmem>>, vector<8x256xf32>
    tpu.vector_store %arg4[%c320, %c0_52], %136 {strides = array<i32>} : memref<392x256xf32, #tpu.memory_space<vmem>>, vector<8x256xf32>,
    %138 = vector.extract_strided_slice %125 {offsets = [0, 178], sizes = [8, 256], strides = [1, 1]} : vector<8x512xf32> to vector<8x256xf32>
    %c376 = arith.constant 376 : index
    %c0_53 = arith.constant 0 : index
    %139 = vector.load %arg4[%c376, %c0_53] : memref<392x256xf32, #tpu.memory_space<vmem>>, vector<8x256xf32>
    tpu.vector_store %arg4[%c376, %c0_53], %138 {strides = array<i32>} : memref<392x256xf32, #tpu.memory_space<vmem>>, vector<8x256xf32>,
    %c3_i32 = arith.constant 3 : i32
    %140 = vector.broadcast %c3_i32 : i32 to vector<1x512xi32>
    %141 = arith.cmpi sge, %18, %140 : vector<1x512xi32>
    %c0_i32_54 = arith.constant 0 : i32
    %142 = arith.sitofp %c0_i32_54 : i32 to f32
    %143 = vector.shape_cast %141 : vector<1x512xi1> to vector<1x512xi1>
    %144 = vector.broadcast %143 : vector<1x512xi1> to vector<8x512xi1>
    %145 = vector.broadcast %142 : f32 to vector<8x512xf32>
    %146 = arith.select %144, %20, %145 : vector<8x512xi1>, vector<8x512xf32>
    %147 = vector.extract_strided_slice %146 {offsets = [0, 83], sizes = [8, 256], strides = [1, 1]} : vector<8x512xf32> to vector<8x256xf32>
    %c48 = arith.constant 48 : index
    %c0_55 = arith.constant 0 : index
    %148 = vector.load %arg4[%c48, %c0_55] : memref<392x256xf32, #tpu.memory_space<vmem>>, vector<8x256xf32>
    tpu.vector_store %arg4[%c48, %c0_55], %147 {strides = array<i32>} : memref<392x256xf32, #tpu.memory_space<vmem>>, vector<8x256xf32>,
    %149 = vector.extract_strided_slice %146 {offsets = [0, 99], sizes = [8, 256], strides = [1, 1]} : vector<8x512xf32> to vector<8x256xf32>
    %c104 = arith.constant 104 : index
    %c0_56 = arith.constant 0 : index
    %150 = vector.load %arg4[%c104, %c0_56] : memref<392x256xf32, #tpu.memory_space<vmem>>, vector<8x256xf32>
    tpu.vector_store %arg4[%c104, %c0_56], %149 {strides = array<i32>} : memref<392x256xf32, #tpu.memory_space<vmem>>, vector<8x256xf32>,
    %151 = vector.extract_strided_slice %146 {offsets = [0, 115], sizes = [8, 256], strides = [1, 1]} : vector<8x512xf32> to vector<8x256xf32>
    %c160 = arith.constant 160 : index
    %c0_57 = arith.constant 0 : index
    %152 = vector.load %arg4[%c160, %c0_57] : memref<392x256xf32, #tpu.memory_space<vmem>>, vector<8x256xf32>
    tpu.vector_store %arg4[%c160, %c0_57], %151 {strides = array<i32>} : memref<392x256xf32, #tpu.memory_space<vmem>>, vector<8x256xf32>,
    %153 = vector.extract_strided_slice %146 {offsets = [0, 131], sizes = [8, 256], strides = [1, 1]} : vector<8x512xf32> to vector<8x256xf32>
    %c216 = arith.constant 216 : index
    %c0_58 = arith.constant 0 : index
    %154 = vector.load %arg4[%c216, %c0_58] : memref<392x256xf32, #tpu.memory_space<vmem>>, vector<8x256xf32>
    tpu.vector_store %arg4[%c216, %c0_58], %153 {strides = array<i32>} : memref<392x256xf32, #tpu.memory_space<vmem>>, vector<8x256xf32>,
    %155 = vector.extract_strided_slice %146 {offsets = [0, 147], sizes = [8, 256], strides = [1, 1]} : vector<8x512xf32> to vector<8x256xf32>
    %c272 = arith.constant 272 : index
    %c0_59 = arith.constant 0 : index
    %156 = vector.load %arg4[%c272, %c0_59] : memref<392x256xf32, #tpu.memory_space<vmem>>, vector<8x256xf32>
    tpu.vector_store %arg4[%c272, %c0_59], %155 {strides = array<i32>} : memref<392x256xf32, #tpu.memory_space<vmem>>, vector<8x256xf32>,
    %157 = vector.extract_strided_slice %146 {offsets = [0, 163], sizes = [8, 256], strides = [1, 1]} : vector<8x512xf32> to vector<8x256xf32>
    %c328 = arith.constant 328 : index
    %c0_60 = arith.constant 0 : index
    %158 = vector.load %arg4[%c328, %c0_60] : memref<392x256xf32, #tpu.memory_space<vmem>>, vector<8x256xf32>
    tpu.vector_store %arg4[%c328, %c0_60], %157 {strides = array<i32>} : memref<392x256xf32, #tpu.memory_space<vmem>>, vector<8x256xf32>,
    %159 = vector.extract_strided_slice %146 {offsets = [0, 179], sizes = [8, 256], strides = [1, 1]} : vector<8x512xf32> to vector<8x256xf32>
    %c384 = arith.constant 384 : index
    %c0_61 = arith.constant 0 : index
    %160 = vector.load %arg4[%c384, %c0_61] : memref<392x256xf32, #tpu.memory_space<vmem>>, vector<8x256xf32>
    tpu.vector_store %arg4[%c384, %c0_61], %159 {strides = array<i32>} : memref<392x256xf32, #tpu.memory_space<vmem>>, vector<8x256xf32>,
    %c0_62 = arith.constant 0 : index
    %c0_63 = arith.constant 0 : index
    %161 = vector.load %arg2[%c0_62, %c0_63] : memref<16x392xf32, #tpu.memory_space<vmem>>, vector<16x392xf32>
    %c0_64 = arith.constant 0 : index
    %c0_65 = arith.constant 0 : index
    %162 = vector.load %arg4[%c0_64, %c0_65] : memref<392x256xf32, #tpu.memory_space<vmem>>, vector<392x256xf32>
    %cst = arith.constant dense<0.000000e+00> : vector<16x256xf32>
    %163 = tpu.matmul %161, %162, %cst {dimension_numbers = #tpu.dot_dimension_numbers<[1], [0], [0], [1], [0, 0, 1, 1], [], []>} : vector<16x392xf32>, vector<392x256xf32>, vector<16x256xf32> -> vector<16x256xf32>
    %164 = vector.extract_strided_slice %163 {offsets = [0, 0], sizes = [8, 256], strides = [1, 1]} : vector<16x256xf32> to vector<8x256xf32>
    %165 = vector.extract_strided_slice %163 {offsets = [8, 0], sizes = [8, 256], strides = [1, 1]} : vector<16x256xf32> to vector<8x256xf32>
    %c0_66 = arith.constant 0 : index
    %c0_67 = arith.constant 0 : index
    %c0_68 = arith.constant 0 : index
    %166 = vector.load %arg1[%c0_66, %c0_67, %c0_68] : memref<1x8x512xf32, #tpu.memory_space<vmem>>, vector<1x8x512xf32>
    %167 = vector.shape_cast %166 : vector<1x8x512xf32> to vector<8x512xf32>
    %168 = vector.extract_strided_slice %167 {offsets = [0, 128], sizes = [8, 256], strides = [1, 1]} : vector<8x512xf32> to vector<8x256xf32>
    %169 = arith.negf %164 : vector<8x256xf32>
    %170 = math.exp %169 : vector<8x256xf32>
    %cst_69 = arith.constant 1.000000e+00 : f32
    %171 = vector.broadcast %cst_69 : f32 to vector<8x256xf32>
    %172 = arith.addf %171, %170 : vector<8x256xf32>
    %173 = arith.divf %171, %172 : vector<8x256xf32>
    %174 = arith.negf %165 : vector<8x256xf32>
    %175 = math.exp %174 : vector<8x256xf32>
    %cst_70 = arith.constant 1.000000e+00 : f32
    %176 = vector.broadcast %cst_70 : f32 to vector<8x256xf32>
    %177 = arith.addf %176, %175 : vector<8x256xf32>
    %178 = arith.divf %176, %177 : vector<8x256xf32>
    %179 = arith.mulf %173, %178 : vector<8x256xf32>
    %180 = arith.mulf %168, %179 : vector<8x256xf32>
    %c0_71 = arith.constant 0 : index
    %c0_72 = arith.constant 0 : index
    %c0_73 = arith.constant 0 : index
    %181 = vector.load %arg3[%c0_71, %c0_72, %c0_73] : memref<1x8x256xf32, #tpu.memory_space<vmem>>, vector<1x8x256xf32>
    %182 = vector.shape_cast %181 : vector<1x8x256xf32> to vector<8x256xf32>
    %183 = vector.shape_cast %180 : vector<8x256xf32> to vector<1x8x256xf32>
    tpu.vector_store %arg3[%c0_71, %c0_72, %c0_73], %183 {strides = array<i32>} : memref<1x8x256xf32, #tpu.memory_space<vmem>>, vector<1x8x256xf32>,
    return
  }
  func.func @transform_0(%arg0: i32) -> (i32, i32, i32) {
    %c0_i32 = arith.constant 0 : i32
    %c0_i32_0 = arith.constant 0 : i32
    %c0_i32_1 = arith.constant 0 : i32
    return %arg0, %c0_i32, %c0_i32_0 : i32, i32, i32
  }
  func.func @transform_1(%arg0: i32) -> (i32, i32) {
    %c0_i32 = arith.constant 0 : i32
    %c0_i32_0 = arith.constant 0 : i32
    %c0_i32_1 = arith.constant 0 : i32
    return %c0_i32, %c0_i32_0 : i32, i32
  }
  func.func @transform_2(%arg0: i32) -> (i32, i32, i32) {
    %c0_i32 = arith.constant 0 : i32
    %c0_i32_0 = arith.constant 0 : i32
    %c0_i32_1 = arith.constant 0 : i32
    return %arg0, %c0_i32, %c0_i32_0 : i32, i32, i32
  }
}

</mosaic_0001>

<llo_original>
// kernel: tpu_custom_call.1
$region0: #{tpu_custom_call.1}
  #allocation0 [shape = 'u32[]', space=smem, size = 0x4, offset = 0x4, fixed_abs, tag = 'smem constant byte address 0x4 - core index']
  #allocation1 [shape = 'u32[144,128]{1,0:T(1,128)}', space=vmem, size = 0x12000, scoped, tag = 'internal scratch']
  #allocation2 [shape = 'f32[392,256]{1,0:T(8,128)}', space=vmem, size = 0x62000, scoped, tag = 'scratch operand']
  %s0 = inlined_call_operand.hbm [shape: f32[2,8,512], index: 0, kind: input, shape index: {}]
  %s1 = inlined_call_operand.hbm [shape: f32[16,392], index: 1, kind: input, shape index: {}]
  %s2 = inlined_call_operand.hbm [shape: f32[2,8,256], index: 2, kind: output, shape index: {}]
  %s3 = sld [smem:[#allocation0]]
  $region49: #{tpu_custom_call.1} parent=0
    _
  %s5 = ssub.s32 1, %s3
  %s6 = scalar_select 0, %s5, %s3
  $region1: #{tpu_custom_call.1} parent=0
    #allocation3 [shape = 'u8[32768]{0}', space=vmem, size = 0x8000, scoped, tag = 'input window, operand 0']
    #allocation4 [shape = 's32[2]{0}', space=sflag, size = 0x8, scoped, tag = 'scoped memory for tpu_custom_call.1']
    #allocation5 [shape = 's32[2]{0}', space=sflag, size = 0x8, scoped, tag = 'scoped memory for tpu_custom_call.1']
    #allocation6 [shape = 'u8[32768]{0}', space=vmem, size = 0x8000, scoped, tag = 'input window, operand 1, single buffered']
    #allocation7 [shape = 's32[1]{0}', space=sflag, size = 0x4, scoped, tag = 'scoped memory for tpu_custom_call.1']
    #allocation8 [shape = 'u8[16384]{0}', space=vmem, size = 0x4000, scoped, tag = 'output window, operand 0']
    %7 = vsyncpa [#allocation4], 0
    %s8 = scalar_lea.sflag [#allocation4], 1
    %9 = vsyncpa %s8, 0
    %10 = vsyncpa [#allocation7], 0
    %11 = vsyncpa [#allocation5], 0
    %s12 = scalar_lea.sflag [#allocation5], 1
    %13 = vsyncpa %s12, 0
    loop: start=0, step=1, limit=4
    $region2: #{tpu_custom_call.1} parent=1 // loop_pre_header
      _
    $region3: #{tpu_custom_call.1} parent=1 // loop_header
      %s15 = sphi 0, %s19
      %p16 = scmp.ge.s32.totalorder %s15, 4
      %s25 = sphi 0, %s27
      %s28 = sphi 0, %s25
      %s29 = sphi 0, %s28
      %s45 = sphi 0, %s29
      %s49 = sphi 0, %s49
      %s51 = sphi 0, %s49
      %s52 = sphi 0, %s51
      %s66 = sphi 0, %s52
      %s72 = sphi 0, %s74
      %s75 = sphi 0, %s72
      %s76 = sphi 0, %s75
      %s92 = sphi 0, %s76
    $region4: #{tpu_custom_call.1} parent=1 // loop_header_branch
      %18 = sbr.rel (%p16) target = $region8
    $region5: #{tpu_custom_call.1} parent=1 // loop_body
      %s20 = ssub.s32 %s15, 1
      %s21 = ssub.s32 %s15, 2
      %s22 = sadd.s32 %s15, 1
      %s23 = ssub.s32 %s15, %s22
      %p24 = scmp.eq.s32.totalorder %s23, 0
      %s26 = sadd.s32 %s25, 1
      %s27 = scalar_select %p24, %s25, %s26
      %p30 = pneg %p24
      %p31 = scmp.eq.s32.totalorder %s15, 1
      %p32 = por %p30, %p31
      %p33 = scmp.ne.s32.totalorder %s25, %s28
      %p34 = scmp.eq.s32.totalorder %s15, 0
      %p35 = por %p33, %p34
      %p36 = scmp.ne.s32.totalorder %s25, %s28
      %p37 = scmp.eq.s32.totalorder %s20, 1
      %p38 = por %p36, %p37
      %p39 = scmp.ne.s32.totalorder %s28, %s29
      %p40 = scmp.eq.s32.totalorder %s20, 0
      %p41 = por %p39, %p40
      %p42 = scmp.ne.s32.totalorder %s28, %s29
      %p43 = scmp.eq.s32.totalorder %s21, 1
      %p44 = por %p42, %p43
      %p46 = scmp.ne.s32.totalorder %s29, %s45
      %p47 = scmp.eq.s32.totalorder %s21, 0
      %p48 = por %p46, %p47
      %s50 = sadd.s32 %s49, 1
      %p53 = scmp.eq.s32.totalorder %s15, 1
      %p54 = scmp.ne.s32.totalorder %s49, %s51
      %p55 = scmp.eq.s32.totalorder %s15, 0
      %p56 = por %p54, %p55
      %p57 = scmp.ne.s32.totalorder %s49, %s51
      %p58 = scmp.eq.s32.totalorder %s20, 1
      %p59 = por %p57, %p58
      %p60 = scmp.ne.s32.totalorder %s51, %s52
      %p61 = scmp.eq.s32.totalorder %s20, 0
      %p62 = por %p60, %p61
      %p63 = scmp.ne.s32.totalorder %s51, %s52
      %p64 = scmp.eq.s32.totalorder %s21, 1
      %p65 = por %p63, %p64
      %p67 = scmp.ne.s32.totalorder %s52, %s66
      %p68 = scmp.eq.s32.totalorder %s21, 0
      %p69 = por %p67, %p68
      %s70 = ssub.s32 %s15, %s22
      %p71 = scmp.eq.s32.totalorder %s70, 0
      %s73 = sadd.s32 %s72, 1
      %s74 = scalar_select %p71, %s72, %s73
      %p77 = pneg %p71
      %p78 = scmp.eq.s32.totalorder %s15, 1
      %p79 = por %p77, %p78
      %p80 = scmp.ne.s32.totalorder %s72, %s75
      %p81 = scmp.eq.s32.totalorder %s15, 0
      %p82 = por %p80, %p81
      %p83 = scmp.ne.s32.totalorder %s72, %s75
      %p84 = scmp.eq.s32.totalorder %s20, 1
      %p85 = por %p83, %p84
      %p86 = scmp.ne.s32.totalorder %s75, %s76
      %p87 = scmp.eq.s32.totalorder %s20, 0
      %p88 = por %p86, %p87
      %p89 = scmp.ne.s32.totalorder %s75, %s76
      %p90 = scmp.eq.s32.totalorder %s21, 1
      %p91 = por %p89, %p90
      %p93 = scmp.ne.s32.totalorder %s76, %s92
      %p94 = scmp.eq.s32.totalorder %s21, 0
      %p95 = por %p93, %p94
      %p96 = scmp.le.s32.totalorder 1, %s15
      %p97 = scmp.lt.s32.totalorder %s15, 3
      %p98 = pnand %p96, %p97
      %p99 = pneg %p98
      // Predicated region
      $region9: #{tpu_custom_call.1} parent=5 // pred_check
        _
      $region10: #{tpu_custom_call.1} parent=5 // pred_check_branch
        %101 = sbr.rel (%p98) target = $region12
      $region11: #{tpu_custom_call.1} parent=5 // pred_region
        %s102 = ssub.s32 %s15, 1
        // Predicated region
        $region13: #{tpu_custom_call.1} parent=11 // pred_check
          %p103 = pneg %p62
        $region14: #{tpu_custom_call.1} parent=11 // pred_check_branch
          %105 = sbr.rel (%p103) target = $region16
        $region15: #{tpu_custom_call.1} parent=11 // pred_region
          %s107 = ssub.s32 1024, 1024
          %108 = vsyncadd [#allocation7], %s107
          %s109 = sshll.u32 [#allocation6], 4
          %s110 = int_to_ptr.vmem [resolvable:$true] %s109
          %115 = dma.hbm_to_vmem [thread:$0]  %s1, 1024, %s110, [#allocation7], 512, 512, 32
        $region16: #{tpu_custom_call.1} parent=11 // pred_fallthru
          _
      $region12: #{tpu_custom_call.1} parent=5 // pred_fallthru
        _
      %p116 = scmp.lt.s32.totalorder %s15, 2
      // Predicated region
      $region17: #{tpu_custom_call.1} parent=5 // pred_check
        %p117 = pneg %p116
      $region18: #{tpu_custom_call.1} parent=5 // pred_check_branch
        %119 = sbr.rel (%p117) target = $region20
      $region19: #{tpu_custom_call.1} parent=5 // pred_region
        // Predicated region
        $region21: #{tpu_custom_call.1} parent=19 // pred_check
          %p120 = pneg %p35
        $region22: #{tpu_custom_call.1} parent=19 // pred_check_branch
          %122 = sbr.rel (%p120) target = $region24
        $region23: #{tpu_custom_call.1} parent=19 // pred_region
          %s123 = sand.u32 %s25, 1
          %s124 = scalar_lea.sflag [#allocation4], %s123
          %s125 = sand.u32 %s25, 1
          %s126 = smul.addr %s125, 32
          %s127 = scalar_lea.vmem [#allocation3], %s126
          %s129 = ssub.s32 512, 512
          %130 = vsyncadd %s124, %s129
          %s131 = smul.addr %s15, 4
          %s132 = smul.addr %s131, 128
          %s133 = scalar_lea.hbm %s0, %s132
          %s135 = sshll.u32 %s127, 4
          %s136 = int_to_ptr.vmem [resolvable:$true] %s135
          %138 = dma.hbm_to_vmem [thread:$0]  %s133, 512, %s136, %s124
        $region24: #{tpu_custom_call.1} parent=19 // pred_fallthru
          _
      $region20: #{tpu_custom_call.1} parent=5 // pred_fallthru
        _
      %p139 = scmp.le.s32.totalorder 1, %s15
      %p140 = scmp.lt.s32.totalorder %s15, 3
      %p141 = pnand %p139, %p140
      %p142 = pneg %p141
      // Predicated region
      $region25: #{tpu_custom_call.1} parent=5 // pred_check
        _
      $region26: #{tpu_custom_call.1} parent=5 // pred_check_branch
        %144 = sbr.rel (%p141) target = $region28
      $region27: #{tpu_custom_call.1} parent=5 // pred_region
        %s145 = ssub.s32 %s15, 1
        %s146 = sand.u32 %s28, 1
        %s147 = scalar_lea.sflag [#allocation4], %s146
        %s148 = sand.u32 %s28, 1
        %s149 = smul.addr %s148, 32
        %s150 = scalar_lea.vmem [#allocation3], %s149
        // Predicated region
        $region29: #{tpu_custom_call.1} parent=27 // pred_check
          %p151 = pneg %p41
        $region30: #{tpu_custom_call.1} parent=27 // pred_check_branch
          %153 = sbr.rel (%p151) target = $region32
        $region31: #{tpu_custom_call.1} parent=27 // pred_region
          %154 = dma.done %s147, 512
        $region32: #{tpu_custom_call.1} parent=27 // pred_fallthru
          _
        // Predicated region
        $region33: #{tpu_custom_call.1} parent=27 // pred_check
          %p155 = pneg %p62
        $region34: #{tpu_custom_call.1} parent=27 // pred_check_branch
          %157 = sbr.rel (%p155) target = $region36
        $region35: #{tpu_custom_call.1} parent=27 // pred_region
          %158 = dma.done [#allocation7], 1024
        $region36: #{tpu_custom_call.1} parent=27 // pred_fallthru
          _
        %s159 = sand.u32 %s28, 1
        %s160 = scalar_lea.sflag [#allocation4], %s159
        %s161 = sand.u32 %s28, 1
        %s162 = smul.addr %s161, 32
        %s163 = scalar_lea.vmem [#allocation3], %s162
        %p164 = pneg %p41
        %p165 = pneg %p38
        %p166 = pneg %p62
        %p167 = pneg %p59
        %p168 = pneg %p88
        %p169 = pneg %p85
        %s170 = sand.u32 %s75, 1
        %s171 = scalar_lea.sflag [#allocation5], %s170
        %s172 = sand.u32 %s75, 1
        %s173 = smul.addr %s172, 16
        %s174 = scalar_lea.vmem [#allocation8], %s173
        %v175 = vlaneseq
        %v176 = vand.u32 %v175, 127
        %v177 = vadd.s32 %v176, 256
        %v178 = vadd.s32 %v176, 384
        %v179 = vsub.s32 %v176, 128
        %v180 = vsub.s32 %v177, 128
        %v181 = vsub.s32 %v178, 128
        %vm182 = vcmp.lt.s32.totalorder %v179, 0
        %v183 = vsub.s32 0, %v179
        %v184 = vsel %vm182, %v183, %v179
        %v185 = vshrl.u32 %v184, 4
        %v186 = vand.u32 %v184, 15
        %v187 = vsub.s32 0, %v186
        %v188 = vsel %vm182, %v187, %v186
        %vm189 = vcmp.lt.s32.totalorder %v176, 0
        %v190 = vsub.s32 0, %v176
        %v191 = vsel %vm189, %v190, %v176
        %v192 = vshrl.u32 %v191, 4
        %v193 = vand.u32 %v191, 15
        %v194 = vsub.s32 0, %v193
        %v195 = vsel %vm189, %v194, %v193
        %vm196 = vcmp.lt.s32.totalorder %v180, 0
        %v197 = vsub.s32 0, %v180
        %v198 = vsel %vm196, %v197, %v180
        %v199 = vshrl.u32 %v198, 4
        %v200 = vand.u32 %v198, 15
        %v201 = vsub.s32 0, %v200
        %v202 = vsel %vm196, %v201, %v200
        %vm203 = vcmp.lt.s32.totalorder %v181, 0
        %v204 = vsub.s32 0, %v181
        %v205 = vsel %vm203, %v204, %v181
        %v206 = vshrl.u32 %v205, 4
        %v207 = vand.u32 %v205, 15
        %v208 = vsub.s32 0, %v207
        %v209 = vsel %vm203, %v208, %v207
        %vm210 = vcmp.ne.s32.totalorder %v188, 0
        %vm211 = vcmp.ne.s32.totalorder %v195, 0
        %vm212 = vcmp.ne.s32.totalorder %v202, 0
        %vm213 = vcmp.ne.s32.totalorder %v209, 0
        %vm214 = vcmp.lt.s32.totalorder %v188, 0
        %vm215 = vcmp.lt.s32.totalorder %v195, 0
        %vm216 = vcmp.lt.s32.totalorder %v202, 0
        %vm217 = vcmp.lt.s32.totalorder %v209, 0
        %vm218 = vmand %vm214, %vm210
        %vm219 = vmand %vm215, %vm211
        %vm220 = vmand %vm216, %vm212
        %vm221 = vmand %vm217, %vm213
        %v222 = vadd.s32 %v188, 16
        %v223 = vadd.s32 %v195, 16
        %v224 = vadd.s32 %v202, 16
        %v225 = vadd.s32 %v209, 16
        %v226 = vsel %vm218, %v222, %v188
        %v227 = vsel %vm219, %v223, %v195
        %v228 = vsel %vm220, %v224, %v202
        %v229 = vsel %vm221, %v225, %v209
        %v230 = vld [vmem:[%s150] sm:$0xff]
        %v231 = vld [vmem:[%s150 + $0x8] sm:$0xff]
        %v232 = vld [vmem:[%s150 + $0x10] sm:$0xff]
        %v233 = vld [vmem:[%s150 + $0x18] sm:$0xff]
        %vm234 = vcmp.lt.s32.totalorder %v226, 13
        %vm235 = vcmp.lt.s32.totalorder %v227, 13
        %vm236 = vcmp.lt.s32.totalorder %v228, 13
        %vm237 = vcmp.lt.s32.totalorder %v229, 13
        %v238 = vsel %vm234, 1, 0
        %v239 = vsel %vm235, 1, 0
        %v240 = vsel %vm236, 1, 0
        %v241 = vsel %vm237, 1, 0
        %vm242 = vcmp.eq.s32.totalorder %v238, 1
        %vm243 = vcmp.eq.s32.totalorder %v239, 1
        %vm244 = vcmp.eq.s32.totalorder %v240, 1
        %vm245 = vcmp.eq.s32.totalorder %v241, 1
        %v246 = vsel %vm242, %v230, 0.0
        %v247 = vsel %vm243, %v231, 0.0
        %v248 = vsel %vm244, %v232, 0.0
        %v249 = vsel %vm245, %v233, 0.0
        %253 = vrot.lane.b32.xlu0 %v246, 51
        %v254 = vpop.permute.xlu0 %253
        %255 = vrot.lane.b32.xlu0 %v247, 51
        %v256 = vpop.permute.xlu0 %255
        %257 = vrot.lane.b32.xlu0 %v248, 51
        %v258 = vpop.permute.xlu0 %257
        %vm259 = vcmask 416768
        %v260 = vsel %vm259, %v254, %v256
        %v261 = vsel %vm259, %v256, %v258
        %264 = vst [vmem:[#allocation2] sm:$0xff] %v260
        %265 = vst [vmem:[#allocation2 + $0x8] sm:$0xff] %v261
        %266 = vrot.lane.b32.xlu0 %v246, 35
        %v267 = vpop.permute.xlu0 %266
        %268 = vrot.lane.b32.xlu0 %v247, 35
        %v269 = vpop.permute.xlu0 %268
        %270 = vrot.lane.b32.xlu0 %v248, 35
        %v271 = vpop.permute.xlu0 %270
        %vm272 = vcmask 285696
        %v273 = vsel %vm272, %v267, %v269
        %v274 = vsel %vm272, %v269, %v271
        %277 = vst [vmem:[#allocation2 + $0x70] sm:$0xff] %v273
        %278 = vst [vmem:[#allocation2 + $0x78] sm:$0xff] %v274
        %279 = vrot.lane.b32.xlu0 %v246, 19
        %v280 = vpop.permute.xlu0 %279
        %281 = vrot.lane.b32.xlu0 %v247, 19
        %v282 = vpop.permute.xlu0 %281
        %283 = vrot.lane.b32.xlu0 %v248, 19
        %v284 = vpop.permute.xlu0 %283
        %vm285 = vcmask 154624
        %v286 = vsel %vm285, %v280, %v282
        %v287 = vsel %vm285, %v282, %v284
        %290 = vst [vmem:[#allocation2 + $0xe0] sm:$0xff] %v286
        %291 = vst [vmem:[#allocation2 + $0xe8] sm:$0xff] %v287
        %292 = vrot.lane.b32.xlu0 %v246, 3
        %v293 = vpop.permute.xlu0 %292
        %294 = vrot.lane.b32.xlu0 %v247, 3
        %v295 = vpop.permute.xlu0 %294
        %296 = vrot.lane.b32.xlu0 %v248, 3
        %v297 = vpop.permute.xlu0 %296
        %vm298 = vcmask 23552
        %v299 = vsel %vm298, %v293, %v295
        %v300 = vsel %vm298, %v295, %v297
        %303 = vst [vmem:[#allocation2 + $0x150] sm:$0xff] %v299
        %304 = vst [vmem:[#allocation2 + $0x158] sm:$0xff] %v300
        %306 = vrot.lane.b32.xlu0 %v247, 115
        %v307 = vpop.permute.xlu0 %306
        %308 = vrot.lane.b32.xlu0 %v248, 115
        %v309 = vpop.permute.xlu0 %308
        %310 = vrot.lane.b32.xlu0 %v249, 115
        %v311 = vpop.permute.xlu0 %310
        %vm312 = vcmask 941056
        %v313 = vsel %vm312, %v307, %v309
        %v314 = vsel %vm312, %v309, %v311
        %317 = vst [vmem:[#allocation2 + $0x1c0] sm:$0xff] %v313
        %318 = vst [vmem:[#allocation2 + $0x1c8] sm:$0xff] %v314
        %319 = vrot.lane.b32.xlu0 %v247, 99
        %v320 = vpop.permute.xlu0 %319
        %321 = vrot.lane.b32.xlu0 %v248, 99
        %v322 = vpop.permute.xlu0 %321
        %323 = vrot.lane.b32.xlu0 %v249, 99
        %v324 = vpop.permute.xlu0 %323
        %vm325 = vcmask 809984
        %v326 = vsel %vm325, %v320, %v322
        %v327 = vsel %vm325, %v322, %v324
        %330 = vst [vmem:[#allocation2 + $0x230] sm:$0xff] %v326
        %331 = vst [vmem:[#allocation2 + $0x238] sm:$0xff] %v327
        %332 = vrot.lane.b32.xlu0 %v247, 83
        %v333 = vpop.permute.xlu0 %332
        %334 = vrot.lane.b32.xlu0 %v248, 83
        %v335 = vpop.permute.xlu0 %334
        %336 = vrot.lane.b32.xlu0 %v249, 83
        %v337 = vpop.permute.xlu0 %336
        %vm338 = vcmask 678912
        %v339 = vsel %vm338, %v333, %v335
        %v340 = vsel %vm338, %v335, %v337
        %343 = vst [vmem:[#allocation2 + $0x2a0] sm:$0xff] %v339
        %344 = vst [vmem:[#allocation2 + $0x2a8] sm:$0xff] %v340
        %vm345 = vcmp.lt.s32.totalorder %v226, 14
        %vm346 = vcmp.lt.s32.totalorder %v227, 14
        %vm347 = vcmp.lt.s32.totalorder %v228, 14
        %vm348 = vcmp.lt.s32.totalorder %v229, 14
        %v349 = vsel %vm345, 1, 0
        %v350 = vsel %vm346, 1, 0
        %v351 = vsel %vm347, 1, 0
        %v352 = vsel %vm348, 1, 0
        %vm353 = vcmp.eq.s32.totalorder %v349, 1
        %vm354 = vcmp.eq.s32.totalorder %v350, 1
        %vm355 = vcmp.eq.s32.totalorder %v351, 1
        %vm356 = vcmp.eq.s32.totalorder %v352, 1
        %v357 = vsel %vm353, %v230, 0.0
        %v358 = vsel %vm354, %v231, 0.0
        %v359 = vsel %vm355, %v232, 0.0
        %v360 = vsel %vm356, %v233, 0.0
        %364 = vrot.lane.b32.xlu0 %v357, 50
        %v365 = vpop.permute.xlu0 %364
        %366 = vrot.lane.b32.xlu0 %v358, 50
        %v367 = vpop.permute.xlu0 %366
        %368 = vrot.lane.b32.xlu0 %v359, 50
        %v369 = vpop.permute.xlu0 %368
        %vm370 = vcmask 408576
        %v371 = vsel %vm370, %v365, %v367
        %v372 = vsel %vm370, %v367, %v369
        %375 = vst [vmem:[#allocation2 + $0x10] sm:$0xff] %v371
        %376 = vst [vmem:[#allocation2 + $0x18] sm:$0xff] %v372
        %377 = vrot.lane.b32.xlu0 %v357, 34
        %v378 = vpop.permute.xlu0 %377
        %379 = vrot.lane.b32.xlu0 %v358, 34
        %v380 = vpop.permute.xlu0 %379
        %381 = vrot.lane.b32.xlu0 %v359, 34
        %v382 = vpop.permute.xlu0 %381
        %vm383 = vcmask 277504
        %v384 = vsel %vm383, %v378, %v380
        %v385 = vsel %vm383, %v380, %v382
        %388 = vst [vmem:[#allocation2 + $0x80] sm:$0xff] %v384
        %389 = vst [vmem:[#allocation2 + $0x88] sm:$0xff] %v385
        %390 = vrot.lane.b32.xlu0 %v357, 18
        %v391 = vpop.permute.xlu0 %390
        %392 = vrot.lane.b32.xlu0 %v358, 18
        %v393 = vpop.permute.xlu0 %392
        %394 = vrot.lane.b32.xlu0 %v359, 18
        %v395 = vpop.permute.xlu0 %394
        %vm396 = vcmask 146432
        %v397 = vsel %vm396, %v391, %v393
        %v398 = vsel %vm396, %v393, %v395
        %401 = vst [vmem:[#allocation2 + $0xf0] sm:$0xff] %v397
        %402 = vst [vmem:[#allocation2 + $0xf8] sm:$0xff] %v398
        %403 = vrot.lane.b32.xlu0 %v357, 2
        %v404 = vpop.permute.xlu0 %403
        %405 = vrot.lane.b32.xlu0 %v358, 2
        %v406 = vpop.permute.xlu0 %405
        %407 = vrot.lane.b32.xlu0 %v359, 2
        %v408 = vpop.permute.xlu0 %407
        %vm409 = vcmask 15360
        %v410 = vsel %vm409, %v404, %v406
        %v411 = vsel %vm409, %v406, %v408
        %414 = vst [vmem:[#allocation2 + $0x160] sm:$0xff] %v410
        %415 = vst [vmem:[#allocation2 + $0x168] sm:$0xff] %v411
        %417 = vrot.lane.b32.xlu0 %v358, 114
        %v418 = vpop.permute.xlu0 %417
        %419 = vrot.lane.b32.xlu0 %v359, 114
        %v420 = vpop.permute.xlu0 %419
        %421 = vrot.lane.b32.xlu0 %v360, 114
        %v422 = vpop.permute.xlu0 %421
        %vm423 = vcmask 932864
        %v424 = vsel %vm423, %v418, %v420
        %v425 = vsel %vm423, %v420, %v422
        %428 = vst [vmem:[#allocation2 + $0x1d0] sm:$0xff] %v424
        %429 = vst [vmem:[#allocation2 + $0x1d8] sm:$0xff] %v425
        %430 = vrot.lane.b32.xlu0 %v358, 98
        %v431 = vpop.permute.xlu0 %430
        %432 = vrot.lane.b32.xlu0 %v359, 98
        %v433 = vpop.permute.xlu0 %432
        %434 = vrot.lane.b32.xlu0 %v360, 98
        %v435 = vpop.permute.xlu0 %434
        %vm436 = vcmask 801792
        %v437 = vsel %vm436, %v431, %v433
        %v438 = vsel %vm436, %v433, %v435
        %441 = vst [vmem:[#allocation2 + $0x240] sm:$0xff] %v437
        %442 = vst [vmem:[#allocation2 + $0x248] sm:$0xff] %v438
        %443 = vrot.lane.b32.xlu0 %v358, 82
        %v444 = vpop.permute.xlu0 %443
        %445 = vrot.lane.b32.xlu0 %v359, 82
        %v446 = vpop.permute.xlu0 %445
        %447 = vrot.lane.b32.xlu0 %v360, 82
        %v448 = vpop.permute.xlu0 %447
        %vm449 = vcmask 670720
        %v450 = vsel %vm449, %v444, %v446
        %v451 = vsel %vm449, %v446, %v448
        %454 = vst [vmem:[#allocation2 + $0x2b0] sm:$0xff] %v450
        %455 = vst [vmem:[#allocation2 + $0x2b8] sm:$0xff] %v451
        %vm456 = vcmp.lt.s32.totalorder %v226, 15
        %vm457 = vcmp.lt.s32.totalorder %v227, 15
        %vm458 = vcmp.lt.s32.totalorder %v228, 15
        %vm459 = vcmp.lt.s32.totalorder %v229, 15
        %v460 = vsel %vm456, 1, 0
        %v461 = vsel %vm457, 1, 0
        %v462 = vsel %vm458, 1, 0
        %v463 = vsel %vm459, 1, 0
        %vm464 = vcmp.eq.s32.totalorder %v460, 1
        %vm465 = vcmp.eq.s32.totalorder %v461, 1
        %vm466 = vcmp.eq.s32.totalorder %v462, 1
        %vm467 = vcmp.eq.s32.totalorder %v463, 1
        %v468 = vsel %vm464, %v230, 0.0
        %v469 = vsel %vm465, %v231, 0.0
        %v470 = vsel %vm466, %v232, 0.0
        %v471 = vsel %vm467, %v233, 0.0
        %475 = vrot.lane.b32.xlu0 %v468, 49
        %v476 = vpop.permute.xlu0 %475
        %477 = vrot.lane.b32.xlu0 %v469, 49
        %v478 = vpop.permute.xlu0 %477
        %479 = vrot.lane.b32.xlu0 %v470, 49
        %v480 = vpop.permute.xlu0 %479
        %vm481 = vcmask 400384
        %v482 = vsel %vm481, %v476, %v478
        %v483 = vsel %vm481, %v478, %v480
        %486 = vst [vmem:[#allocation2 + $0x20] sm:$0xff] %v482
        %487 = vst [vmem:[#allocation2 + $0x28] sm:$0xff] %v483
        %488 = vrot.lane.b32.xlu0 %v468, 33
        %v489 = vpop.permute.xlu0 %488
        %490 = vrot.lane.b32.xlu0 %v469, 33
        %v491 = vpop.permute.xlu0 %490
        %492 = vrot.lane.b32.xlu0 %v470, 33
        %v493 = vpop.permute.xlu0 %492
        %vm494 = vcmask 269312
        %v495 = vsel %vm494, %v489, %v491
        %v496 = vsel %vm494, %v491, %v493
        %499 = vst [vmem:[#allocation2 + $0x90] sm:$0xff] %v495
        %500 = vst [vmem:[#allocation2 + $0x98] sm:$0xff] %v496
        %501 = vrot.lane.b32.xlu0 %v468, 17
        %v502 = vpop.permute.xlu0 %501
        %503 = vrot.lane.b32.xlu0 %v469, 17
        %v504 = vpop.permute.xlu0 %503
        %505 = vrot.lane.b32.xlu0 %v470, 17
        %v506 = vpop.permute.xlu0 %505
        %vm507 = vcmask 138240
        %v508 = vsel %vm507, %v502, %v504
        %v509 = vsel %vm507, %v504, %v506
        %512 = vst [vmem:[#allocation2 + $0x100] sm:$0xff] %v508
        %513 = vst [vmem:[#allocation2 + $0x108] sm:$0xff] %v509
        %514 = vrot.lane.b32.xlu0 %v468, 1
        %v515 = vpop.permute.xlu0 %514
        %516 = vrot.lane.b32.xlu0 %v469, 1
        %v517 = vpop.permute.xlu0 %516
        %518 = vrot.lane.b32.xlu0 %v470, 1
        %v519 = vpop.permute.xlu0 %518
        %vm520 = vcmask 7168
        %v521 = vsel %vm520, %v515, %v517
        %v522 = vsel %vm520, %v517, %v519
        %525 = vst [vmem:[#allocation2 + $0x170] sm:$0xff] %v521
        %526 = vst [vmem:[#allocation2 + $0x178] sm:$0xff] %v522
        %528 = vrot.lane.b32.xlu0 %v469, 113
        %v529 = vpop.permute.xlu0 %528
        %530 = vrot.lane.b32.xlu0 %v470, 113
        %v531 = vpop.permute.xlu0 %530
        %532 = vrot.lane.b32.xlu0 %v471, 113
        %v533 = vpop.permute.xlu0 %532
        %vm534 = vcmask 924672
        %v535 = vsel %vm534, %v529, %v531
        %v536 = vsel %vm534, %v531, %v533
        %539 = vst [vmem:[#allocation2 + $0x1e0] sm:$0xff] %v535
        %540 = vst [vmem:[#allocation2 + $0x1e8] sm:$0xff] %v536
        %541 = vrot.lane.b32.xlu0 %v469, 97
        %v542 = vpop.permute.xlu0 %541
        %543 = vrot.lane.b32.xlu0 %v470, 97
        %v544 = vpop.permute.xlu0 %543
        %545 = vrot.lane.b32.xlu0 %v471, 97
        %v546 = vpop.permute.xlu0 %545
        %vm547 = vcmask 793600
        %v548 = vsel %vm547, %v542, %v544
        %v549 = vsel %vm547, %v544, %v546
        %552 = vst [vmem:[#allocation2 + $0x250] sm:$0xff] %v548
        %553 = vst [vmem:[#allocation2 + $0x258] sm:$0xff] %v549
        %554 = vrot.lane.b32.xlu0 %v469, 81
        %v555 = vpop.permute.xlu0 %554
        %556 = vrot.lane.b32.xlu0 %v470, 81
        %v557 = vpop.permute.xlu0 %556
        %558 = vrot.lane.b32.xlu0 %v471, 81
        %v559 = vpop.permute.xlu0 %558
        %vm560 = vcmask 662528
        %v561 = vsel %vm560, %v555, %v557
        %v562 = vsel %vm560, %v557, %v559
        %565 = vst [vmem:[#allocation2 + $0x2c0] sm:$0xff] %v561
        %566 = vst [vmem:[#allocation2 + $0x2c8] sm:$0xff] %v562
        %570 = vrot.lane.b32.xlu0 %v230, 48
        %v571 = vpop.permute.xlu0 %570
        %572 = vrot.lane.b32.xlu0 %v231, 48
        %v573 = vpop.permute.xlu0 %572
        %574 = vrot.lane.b32.xlu0 %v232, 48
        %v575 = vpop.permute.xlu0 %574
        %vm576 = vcmask 392192
        %v577 = vsel %vm576, %v571, %v573
        %v578 = vsel %vm576, %v573, %v575
        %581 = vst [vmem:[#allocation2 + $0x30] sm:$0xff] %v577
        %582 = vst [vmem:[#allocation2 + $0x38] sm:$0xff] %v578
        %583 = vrot.lane.b32.xlu0 %v230, 32
        %v584 = vpop.permute.xlu0 %583
        %585 = vrot.lane.b32.xlu0 %v231, 32
        %v586 = vpop.permute.xlu0 %585
        %587 = vrot.lane.b32.xlu0 %v232, 32
        %v588 = vpop.permute.xlu0 %587
        %vm589 = vcmask 261120
        %v590 = vsel %vm589, %v584, %v586
        %v591 = vsel %vm589, %v586, %v588
        %594 = vst [vmem:[#allocation2 + $0xa0] sm:$0xff] %v590
        %595 = vst [vmem:[#allocation2 + $0xa8] sm:$0xff] %v591
        %596 = vrot.lane.b32.xlu0 %v230, 16
        %v597 = vpop.permute.xlu0 %596
        %598 = vrot.lane.b32.xlu0 %v231, 16
        %v599 = vpop.permute.xlu0 %598
        %600 = vrot.lane.b32.xlu0 %v232, 16
        %v601 = vpop.permute.xlu0 %600
        %vm602 = vcmask 130048
        %v603 = vsel %vm602, %v597, %v599
        %v604 = vsel %vm602, %v599, %v601
        %607 = vst [vmem:[#allocation2 + $0x110] sm:$0xff] %v603
        %608 = vst [vmem:[#allocation2 + $0x118] sm:$0xff] %v604
        %609 = vst [vmem:[#allocation2 + $0x180] sm:$0xff] %v231
        %610 = vst [vmem:[#allocation2 + $0x188] sm:$0xff] %v232
        %612 = vrot.lane.b32.xlu0 %v231, 112
        %v613 = vpop.permute.xlu0 %612
        %614 = vrot.lane.b32.xlu0 %v232, 112
        %v615 = vpop.permute.xlu0 %614
        %616 = vrot.lane.b32.xlu0 %v233, 112
        %v617 = vpop.permute.xlu0 %616
        %vm618 = vcmask 916480
        %v619 = vsel %vm618, %v613, %v615
        %v620 = vsel %vm618, %v615, %v617
        %623 = vst [vmem:[#allocation2 + $0x1f0] sm:$0xff] %v619
        %624 = vst [vmem:[#allocation2 + $0x1f8] sm:$0xff] %v620
        %625 = vrot.lane.b32.xlu0 %v231, 96
        %v626 = vpop.permute.xlu0 %625
        %627 = vrot.lane.b32.xlu0 %v232, 96
        %v628 = vpop.permute.xlu0 %627
        %629 = vrot.lane.b32.xlu0 %v233, 96
        %v630 = vpop.permute.xlu0 %629
        %vm631 = vcmask 785408
        %v632 = vsel %vm631, %v626, %v628
        %v633 = vsel %vm631, %v628, %v630
        %636 = vst [vmem:[#allocation2 + $0x260] sm:$0xff] %v632
        %637 = vst [vmem:[#allocation2 + $0x268] sm:$0xff] %v633
        %638 = vrot.lane.b32.xlu0 %v231, 80
        %v639 = vpop.permute.xlu0 %638
        %640 = vrot.lane.b32.xlu0 %v232, 80
        %v641 = vpop.permute.xlu0 %640
        %642 = vrot.lane.b32.xlu0 %v233, 80
        %v643 = vpop.permute.xlu0 %642
        %vm644 = vcmask 654336
        %v645 = vsel %vm644, %v639, %v641
        %v646 = vsel %vm644, %v641, %v643
        %649 = vst [vmem:[#allocation2 + $0x2d0] sm:$0xff] %v645
        %650 = vst [vmem:[#allocation2 + $0x2d8] sm:$0xff] %v646
        %vm651 = vcmp.ge.s32.totalorder %v226, 1
        %vm652 = vcmp.ge.s32.totalorder %v227, 1
        %vm653 = vcmp.ge.s32.totalorder %v228, 1
        %vm654 = vcmp.ge.s32.totalorder %v229, 1
        %v655 = vsel %vm651, 1, 0
        %v656 = vsel %vm652, 1, 0
        %v657 = vsel %vm653, 1, 0
        %v658 = vsel %vm654, 1, 0
        %vm659 = vcmp.eq.s32.totalorder %v655, 1
        %vm660 = vcmp.eq.s32.totalorder %v656, 1
        %vm661 = vcmp.eq.s32.totalorder %v657, 1
        %vm662 = vcmp.eq.s32.totalorder %v658, 1
        %v663 = vsel %vm659, %v230, 0.0
        %v664 = vsel %vm660, %v231, 0.0
        %v665 = vsel %vm661, %v232, 0.0
        %v666 = vsel %vm662, %v233, 0.0
        %670 = vrot.lane.b32.xlu0 %v663, 47
        %v671 = vpop.permute.xlu0 %670
        %672 = vrot.lane.b32.xlu0 %v664, 47
        %v673 = vpop.permute.xlu0 %672
        %674 = vrot.lane.b32.xlu0 %v665, 47
        %v675 = vpop.permute.xlu0 %674
        %vm676 = vcmask 384000
        %v677 = vsel %vm676, %v671, %v673
        %v678 = vsel %vm676, %v673, %v675
        %681 = vst [vmem:[#allocation2 + $0x40] sm:$0xff] %v677
        %682 = vst [vmem:[#allocation2 + $0x48] sm:$0xff] %v678
        %683 = vrot.lane.b32.xlu0 %v663, 31
        %v684 = vpop.permute.xlu0 %683
        %685 = vrot.lane.b32.xlu0 %v664, 31
        %v686 = vpop.permute.xlu0 %685
        %687 = vrot.lane.b32.xlu0 %v665, 31
        %v688 = vpop.permute.xlu0 %687
        %vm689 = vcmask 252928
        %v690 = vsel %vm689, %v684, %v686
        %v691 = vsel %vm689, %v686, %v688
        %694 = vst [vmem:[#allocation2 + $0xb0] sm:$0xff] %v690
        %695 = vst [vmem:[#allocation2 + $0xb8] sm:$0xff] %v691
        %696 = vrot.lane.b32.xlu0 %v663, 15
        %v697 = vpop.permute.xlu0 %696
        %698 = vrot.lane.b32.xlu0 %v664, 15
        %v699 = vpop.permute.xlu0 %698
        %700 = vrot.lane.b32.xlu0 %v665, 15
        %v701 = vpop.permute.xlu0 %700
        %vm702 = vcmask 121856
        %v703 = vsel %vm702, %v697, %v699
        %v704 = vsel %vm702, %v699, %v701
        %707 = vst [vmem:[#allocation2 + $0x120] sm:$0xff] %v703
        %708 = vst [vmem:[#allocation2 + $0x128] sm:$0xff] %v704
        %710 = vrot.lane.b32.xlu0 %v664, 127
        %v711 = vpop.permute.xlu0 %710
        %712 = vrot.lane.b32.xlu0 %v665, 127
        %v713 = vpop.permute.xlu0 %712
        %714 = vrot.lane.b32.xlu0 %v666, 127
        %v715 = vpop.permute.xlu0 %714
        %vm716 = vcmask 1039360
        %v717 = vsel %vm716, %v711, %v713
        %v718 = vsel %vm716, %v713, %v715
        %721 = vst [vmem:[#allocation2 + $0x190] sm:$0xff] %v717
        %722 = vst [vmem:[#allocation2 + $0x198] sm:$0xff] %v718
        %723 = vrot.lane.b32.xlu0 %v664, 111
        %v724 = vpop.permute.xlu0 %723
        %725 = vrot.lane.b32.xlu0 %v665, 111
        %v726 = vpop.permute.xlu0 %725
        %727 = vrot.lane.b32.xlu0 %v666, 111
        %v728 = vpop.permute.xlu0 %727
        %vm729 = vcmask 908288
        %v730 = vsel %vm729, %v724, %v726
        %v731 = vsel %vm729, %v726, %v728
        %734 = vst [vmem:[#allocation2 + $0x200] sm:$0xff] %v730
        %735 = vst [vmem:[#allocation2 + $0x208] sm:$0xff] %v731
        %736 = vrot.lane.b32.xlu0 %v664, 95
        %v737 = vpop.permute.xlu0 %736
        %738 = vrot.lane.b32.xlu0 %v665, 95
        %v739 = vpop.permute.xlu0 %738
        %740 = vrot.lane.b32.xlu0 %v666, 95
        %v741 = vpop.permute.xlu0 %740
        %vm742 = vcmask 777216
        %v743 = vsel %vm742, %v737, %v739
        %v744 = vsel %vm742, %v739, %v741
        %747 = vst [vmem:[#allocation2 + $0x270] sm:$0xff] %v743
        %748 = vst [vmem:[#allocation2 + $0x278] sm:$0xff] %v744
        %749 = vrot.lane.b32.xlu0 %v664, 79
        %v750 = vpop.permute.xlu0 %749
        %751 = vrot.lane.b32.xlu0 %v665, 79
        %v752 = vpop.permute.xlu0 %751
        %753 = vrot.lane.b32.xlu0 %v666, 79
        %v754 = vpop.permute.xlu0 %753
        %vm755 = vcmask 646144
        %v756 = vsel %vm755, %v750, %v752
        %v757 = vsel %vm755, %v752, %v754
        %760 = vst [vmem:[#allocation2 + $0x2e0] sm:$0xff] %v756
        %761 = vst [vmem:[#allocation2 + $0x2e8] sm:$0xff] %v757
        %vm762 = vcmp.ge.s32.totalorder %v226, 2
        %vm763 = vcmp.ge.s32.totalorder %v227, 2
        %vm764 = vcmp.ge.s32.totalorder %v228, 2
        %vm765 = vcmp.ge.s32.totalorder %v229, 2
        %v766 = vsel %vm762, 1, 0
        %v767 = vsel %vm763, 1, 0
        %v768 = vsel %vm764, 1, 0
        %v769 = vsel %vm765, 1, 0
        %vm770 = vcmp.eq.s32.totalorder %v766, 1
        %vm771 = vcmp.eq.s32.totalorder %v767, 1
        %vm772 = vcmp.eq.s32.totalorder %v768, 1
        %vm773 = vcmp.eq.s32.totalorder %v769, 1
        %v774 = vsel %vm770, %v230, 0.0
        %v775 = vsel %vm771, %v231, 0.0
        %v776 = vsel %vm772, %v232, 0.0
        %v777 = vsel %vm773, %v233, 0.0
        %781 = vrot.lane.b32.xlu0 %v774, 46
        %v782 = vpop.permute.xlu0 %781
        %783 = vrot.lane.b32.xlu0 %v775, 46
        %v784 = vpop.permute.xlu0 %783
        %785 = vrot.lane.b32.xlu0 %v776, 46
        %v786 = vpop.permute.xlu0 %785
        %vm787 = vcmask 375808
        %v788 = vsel %vm787, %v782, %v784
        %v789 = vsel %vm787, %v784, %v786
        %792 = vst [vmem:[#allocation2 + $0x50] sm:$0xff] %v788
        %793 = vst [vmem:[#allocation2 + $0x58] sm:$0xff] %v789
        %794 = vrot.lane.b32.xlu0 %v774, 30
        %v795 = vpop.permute.xlu0 %794
        %796 = vrot.lane.b32.xlu0 %v775, 30
        %v797 = vpop.permute.xlu0 %796
        %798 = vrot.lane.b32.xlu0 %v776, 30
        %v799 = vpop.permute.xlu0 %798
        %vm800 = vcmask 244736
        %v801 = vsel %vm800, %v795, %v797
        %v802 = vsel %vm800, %v797, %v799
        %805 = vst [vmem:[#allocation2 + $0xc0] sm:$0xff] %v801
        %806 = vst [vmem:[#allocation2 + $0xc8] sm:$0xff] %v802
        %807 = vrot.lane.b32.xlu0 %v774, 14
        %v808 = vpop.permute.xlu0 %807
        %809 = vrot.lane.b32.xlu0 %v775, 14
        %v810 = vpop.permute.xlu0 %809
        %811 = vrot.lane.b32.xlu0 %v776, 14
        %v812 = vpop.permute.xlu0 %811
        %vm813 = vcmask 113664
        %v814 = vsel %vm813, %v808, %v810
        %v815 = vsel %vm813, %v810, %v812
        %818 = vst [vmem:[#allocation2 + $0x130] sm:$0xff] %v814
        %819 = vst [vmem:[#allocation2 + $0x138] sm:$0xff] %v815
        %821 = vrot.lane.b32.xlu0 %v775, 126
        %v822 = vpop.permute.xlu0 %821
        %823 = vrot.lane.b32.xlu0 %v776, 126
        %v824 = vpop.permute.xlu0 %823
        %825 = vrot.lane.b32.xlu0 %v777, 126
        %v826 = vpop.permute.xlu0 %825
        %vm827 = vcmask 1031168
        %v828 = vsel %vm827, %v822, %v824
        %v829 = vsel %vm827, %v824, %v826
        %832 = vst [vmem:[#allocation2 + $0x1a0] sm:$0xff] %v828
        %833 = vst [vmem:[#allocation2 + $0x1a8] sm:$0xff] %v829
        %834 = vrot.lane.b32.xlu0 %v775, 110
        %v835 = vpop.permute.xlu0 %834
        %836 = vrot.lane.b32.xlu0 %v776, 110
        %v837 = vpop.permute.xlu0 %836
        %838 = vrot.lane.b32.xlu0 %v777, 110
        %v839 = vpop.permute.xlu0 %838
        %vm840 = vcmask 900096
        %v841 = vsel %vm840, %v835, %v837
        %v842 = vsel %vm840, %v837, %v839
        %845 = vst [vmem:[#allocation2 + $0x210] sm:$0xff] %v841
        %846 = vst [vmem:[#allocation2 + $0x218] sm:$0xff] %v842
        %847 = vrot.lane.b32.xlu0 %v775, 94
        %v848 = vpop.permute.xlu0 %847
        %849 = vrot.lane.b32.xlu0 %v776, 94
        %v850 = vpop.permute.xlu0 %849
        %851 = vrot.lane.b32.xlu0 %v777, 94
        %v852 = vpop.permute.xlu0 %851
        %vm853 = vcmask 769024
        %v854 = vsel %vm853, %v848, %v850
        %v855 = vsel %vm853, %v850, %v852
        %858 = vst [vmem:[#allocation2 + $0x280] sm:$0xff] %v854
        %859 = vst [vmem:[#allocation2 + $0x288] sm:$0xff] %v855
        %860 = vrot.lane.b32.xlu0 %v775, 78
        %v861 = vpop.permute.xlu0 %860
        %862 = vrot.lane.b32.xlu0 %v776, 78
        %v863 = vpop.permute.xlu0 %862
        %864 = vrot.lane.b32.xlu0 %v777, 78
        %v865 = vpop.permute.xlu0 %864
        %vm866 = vcmask 637952
        %v867 = vsel %vm866, %v861, %v863
        %v868 = vsel %vm866, %v863, %v865
        %871 = vst [vmem:[#allocation2 + $0x2f0] sm:$0xff] %v867
        %872 = vst [vmem:[#allocation2 + $0x2f8] sm:$0xff] %v868
        %vm873 = vcmp.ge.s32.totalorder %v226, 3
        %vm874 = vcmp.ge.s32.totalorder %v227, 3
        %vm875 = vcmp.ge.s32.totalorder %v228, 3
        %vm876 = vcmp.ge.s32.totalorder %v229, 3
        %v877 = vsel %vm873, 1, 0
        %v878 = vsel %vm874, 1, 0
        %v879 = vsel %vm875, 1, 0
        %v880 = vsel %vm876, 1, 0
        %vm881 = vcmp.eq.s32.totalorder %v877, 1
        %vm882 = vcmp.eq.s32.totalorder %v878, 1
        %vm883 = vcmp.eq.s32.totalorder %v879, 1
        %vm884 = vcmp.eq.s32.totalorder %v880, 1
        %v885 = vsel %vm881, %v230, 0.0
        %v886 = vsel %vm882, %v231, 0.0
        %v887 = vsel %vm883, %v232, 0.0
        %v888 = vsel %vm884, %v233, 0.0
        %892 = vrot.lane.b32.xlu0 %v885, 45
        %v893 = vpop.permute.xlu0 %892
        %894 = vrot.lane.b32.xlu0 %v886, 45
        %v895 = vpop.permute.xlu0 %894
        %896 = vrot.lane.b32.xlu0 %v887, 45
        %v897 = vpop.permute.xlu0 %896
        %vm898 = vcmask 367616
        %v899 = vsel %vm898, %v893, %v895
        %v900 = vsel %vm898, %v895, %v897
        %903 = vst [vmem:[#allocation2 + $0x60] sm:$0xff] %v899
        %904 = vst [vmem:[#allocation2 + $0x68] sm:$0xff] %v900
        %905 = vrot.lane.b32.xlu0 %v885, 29
        %v906 = vpop.permute.xlu0 %905
        %907 = vrot.lane.b32.xlu0 %v886, 29
        %v908 = vpop.permute.xlu0 %907
        %909 = vrot.lane.b32.xlu0 %v887, 29
        %v910 = vpop.permute.xlu0 %909
        %vm911 = vcmask 236544
        %v912 = vsel %vm911, %v906, %v908
        %v913 = vsel %vm911, %v908, %v910
        %916 = vst [vmem:[#allocation2 + $0xd0] sm:$0xff] %v912
        %917 = vst [vmem:[#allocation2 + $0xd8] sm:$0xff] %v913
        %918 = vrot.lane.b32.xlu0 %v885, 13
        %v919 = vpop.permute.xlu0 %918
        %920 = vrot.lane.b32.xlu0 %v886, 13
        %v921 = vpop.permute.xlu0 %920
        %922 = vrot.lane.b32.xlu0 %v887, 13
        %v923 = vpop.permute.xlu0 %922
        %vm924 = vcmask 105472
        %v925 = vsel %vm924, %v919, %v921
        %v926 = vsel %vm924, %v921, %v923
        %929 = vst [vmem:[#allocation2 + $0x140] sm:$0xff] %v925
        %930 = vst [vmem:[#allocation2 + $0x148] sm:$0xff] %v926
        %932 = vrot.lane.b32.xlu0 %v886, 125
        %v933 = vpop.permute.xlu0 %932
        %934 = vrot.lane.b32.xlu0 %v887, 125
        %v935 = vpop.permute.xlu0 %934
        %936 = vrot.lane.b32.xlu0 %v888, 125
        %v937 = vpop.permute.xlu0 %936
        %vm938 = vcmask 1022976
        %v939 = vsel %vm938, %v933, %v935
        %v940 = vsel %vm938, %v935, %v937
        %943 = vst [vmem:[#allocation2 + $0x1b0] sm:$0xff] %v939
        %944 = vst [vmem:[#allocation2 + $0x1b8] sm:$0xff] %v940
        %945 = vrot.lane.b32.xlu0 %v886, 109
        %v946 = vpop.permute.xlu0 %945
        %947 = vrot.lane.b32.xlu0 %v887, 109
        %v948 = vpop.permute.xlu0 %947
        %949 = vrot.lane.b32.xlu0 %v888, 109
        %v950 = vpop.permute.xlu0 %949
        %vm951 = vcmask 891904
        %v952 = vsel %vm951, %v946, %v948
        %v953 = vsel %vm951, %v948, %v950
        %956 = vst [vmem:[#allocation2 + $0x220] sm:$0xff] %v952
        %957 = vst [vmem:[#allocation2 + $0x228] sm:$0xff] %v953
        %958 = vrot.lane.b32.xlu0 %v886, 93
        %v959 = vpop.permute.xlu0 %958
        %960 = vrot.lane.b32.xlu0 %v887, 93
        %v961 = vpop.permute.xlu0 %960
        %962 = vrot.lane.b32.xlu0 %v888, 93
        %v963 = vpop.permute.xlu0 %962
        %vm964 = vcmask 760832
        %v965 = vsel %vm964, %v959, %v961
        %v966 = vsel %vm964, %v961, %v963
        %969 = vst [vmem:[#allocation2 + $0x290] sm:$0xff] %v965
        %970 = vst [vmem:[#allocation2 + $0x298] sm:$0xff] %v966
        %971 = vrot.lane.b32.xlu0 %v886, 77
        %v972 = vpop.permute.xlu0 %971
        %973 = vrot.lane.b32.xlu0 %v887, 77
        %v974 = vpop.permute.xlu0 %973
        %975 = vrot.lane.b32.xlu0 %v888, 77
        %v976 = vpop.permute.xlu0 %975
        %vm977 = vcmask 629760
        %v978 = vsel %vm977, %v972, %v974
        %v979 = vsel %vm977, %v974, %v976
        %982 = vst [vmem:[#allocation2 + $0x300] sm:$0xff] %v978
        %983 = vst [vmem:[#allocation2 + $0x308] sm:$0xff] %v979
        %v984 = vld [vmem:[#allocation6] sm:$0xff]
        %v985 = vld [vmem:[#allocation6 + $0x8] sm:$0xff]
        %v986 = vld [vmem:[#allocation6 + $0x10] sm:$0xff]
        %v987 = vld [vmem:[#allocation6 + $0x18] sm:$0xff]
        %v988 = vld [vmem:[#allocation6 + $0x20] sm:$0xff]
        %v989 = vld [vmem:[#allocation6 + $0x28] sm:$0xff]
        %v990 = vld [vmem:[#allocation6 + $0x30] sm:$0xff]
        %v991 = vld [vmem:[#allocation6 + $0x38] sm:$0xff]
        %v992 = vld [vmem:[#allocation2] sm:$0xff]
        %v993 = vld [vmem:[#allocation2 + $0x8] sm:$0xff]
        %v994 = vld [vmem:[#allocation2 + $0x10] sm:$0xff]
        %v995 = vld [vmem:[#allocation2 + $0x18] sm:$0xff]
        %v996 = vld [vmem:[#allocation2 + $0x20] sm:$0xff]
        %v997 = vld [vmem:[#allocation2 + $0x28] sm:$0xff]
        %v998 = vld [vmem:[#allocation2 + $0x30] sm:$0xff]
        %v999 = vld [vmem:[#allocation2 + $0x38] sm:$0xff]
        %v1000 = vld [vmem:[#allocation2 + $0x40] sm:$0xff]
        %v1001 = vld [vmem:[#allocation2 + $0x48] sm:$0xff]
        %v1002 = vld [vmem:[#allocation2 + $0x50] sm:$0xff]
        %v1003 = vld [vmem:[#allocation2 + $0x58] sm:$0xff]
        %v1004 = vld [vmem:[#allocation2 + $0x60] sm:$0xff]
        %v1005 = vld [vmem:[#allocation2 + $0x68] sm:$0xff]
        %v1006 = vld [vmem:[#allocation2 + $0x70] sm:$0xff]
        %v1007 = vld [vmem:[#allocation2 + $0x78] sm:$0xff]
        %v1008 = vld [vmem:[#allocation2 + $0x80] sm:$0xff]
        %v1009 = vld [vmem:[#allocation2 + $0x88] sm:$0xff]
        %v1010 = vld [vmem:[#allocation2 + $0x90] sm:$0xff]
        %v1011 = vld [vmem:[#allocation2 + $0x98] sm:$0xff]
        %v1012 = vld [vmem:[#allocation2 + $0xa0] sm:$0xff]
        %v1013 = vld [vmem:[#allocation2 + $0xa8] sm:$0xff]
        %v1014 = vld [vmem:[#allocation2 + $0xb0] sm:$0xff]
        %v1015 = vld [vmem:[#allocation2 + $0xb8] sm:$0xff]
        %v1016 = vld [vmem:[#allocation2 + $0xc0] sm:$0xff]
        %v1017 = vld [vmem:[#allocation2 + $0xc8] sm:$0xff]
        %v1018 = vld [vmem:[#allocation2 + $0xd0] sm:$0xff]
        %v1019 = vld [vmem:[#allocation2 + $0xd8] sm:$0xff]
        %v1020 = vld [vmem:[#allocation2 + $0xe0] sm:$0xff]
        %v1021 = vld [vmem:[#allocation2 + $0xe8] sm:$0xff]
        %v1022 = vld [vmem:[#allocation2 + $0xf0] sm:$0xff]
        %v1023 = vld [vmem:[#allocation2 + $0xf8] sm:$0xff]
        %v1024 = vld [vmem:[#allocation2 + $0x100] sm:$0xff]
        %v1025 = vld [vmem:[#allocation2 + $0x108] sm:$0xff]
        %v1026 = vld [vmem:[#allocation2 + $0x110] sm:$0xff]
        %v1027 = vld [vmem:[#allocation2 + $0x118] sm:$0xff]
        %v1028 = vld [vmem:[#allocation2 + $0x120] sm:$0xff]
        %v1029 = vld [vmem:[#allocation2 + $0x128] sm:$0xff]
        %v1030 = vld [vmem:[#allocation2 + $0x130] sm:$0xff]
        %v1031 = vld [vmem:[#allocation2 + $0x138] sm:$0xff]
        %v1032 = vld [vmem:[#allocation2 + $0x140] sm:$0xff]
        %v1033 = vld [vmem:[#allocation2 + $0x148] sm:$0xff]
        %v1034 = vld [vmem:[#allocation2 + $0x150] sm:$0xff]
        %v1035 = vld [vmem:[#allocation2 + $0x158] sm:$0xff]
        %v1036 = vld [vmem:[#allocation2 + $0x160] sm:$0xff]
        %v1037 = vld [vmem:[#allocation2 + $0x168] sm:$0xff]
        %v1038 = vld [vmem:[#allocation2 + $0x170] sm:$0xff]
        %v1039 = vld [vmem:[#allocation2 + $0x178] sm:$0xff]
        %v1040 = vld [vmem:[#allocation2 + $0x180] sm:$0xff]
        %v1041 = vld [vmem:[#allocation2 + $0x188] sm:$0xff]
        %v1042 = vld [vmem:[#allocation2 + $0x190] sm:$0xff]
        %v1043 = vld [vmem:[#allocation2 + $0x198] sm:$0xff]
        %v1044 = vld [vmem:[#allocation2 + $0x1a0] sm:$0xff]
        %v1045 = vld [vmem:[#allocation2 + $0x1a8] sm:$0xff]
        %v1046 = vld [vmem:[#allocation2 + $0x1b0] sm:$0xff]
        %v1047 = vld [vmem:[#allocation2 + $0x1b8] sm:$0xff]
        %v1048 = vld [vmem:[#allocation2 + $0x1c0] sm:$0xff]
        %v1049 = vld [vmem:[#allocation2 + $0x1c8] sm:$0xff]
        %v1050 = vld [vmem:[#allocation2 + $0x1d0] sm:$0xff]
        %v1051 = vld [vmem:[#allocation2 + $0x1d8] sm:$0xff]
        %v1052 = vld [vmem:[#allocation2 + $0x1e0] sm:$0xff]
        %v1053 = vld [vmem:[#allocation2 + $0x1e8] sm:$0xff]
        %v1054 = vld [vmem:[#allocation2 + $0x1f0] sm:$0xff]
        %v1055 = vld [vmem:[#allocation2 + $0x1f8] sm:$0xff]
        %v1056 = vld [vmem:[#allocation2 + $0x200] sm:$0xff]
        %v1057 = vld [vmem:[#allocation2 + $0x208] sm:$0xff]
        %v1058 = vld [vmem:[#allocation2 + $0x210] sm:$0xff]
        %v1059 = vld [vmem:[#allocation2 + $0x218] sm:$0xff]
        %v1060 = vld [vmem:[#allocation2 + $0x220] sm:$0xff]
        %v1061 = vld [vmem:[#allocation2 + $0x228] sm:$0xff]
        %v1062 = vld [vmem:[#allocation2 + $0x230] sm:$0xff]
        %v1063 = vld [vmem:[#allocation2 + $0x238] sm:$0xff]
        %v1064 = vld [vmem:[#allocation2 + $0x240] sm:$0xff]
        %v1065 = vld [vmem:[#allocation2 + $0x248] sm:$0xff]
        %v1066 = vld [vmem:[#allocation2 + $0x250] sm:$0xff]
        %v1067 = vld [vmem:[#allocation2 + $0x258] sm:$0xff]
        %v1068 = vld [vmem:[#allocation2 + $0x260] sm:$0xff]
        %v1069 = vld [vmem:[#allocation2 + $0x268] sm:$0xff]
        %v1070 = vld [vmem:[#allocation2 + $0x270] sm:$0xff]
        %v1071 = vld [vmem:[#allocation2 + $0x278] sm:$0xff]
        %v1072 = vld [vmem:[#allocation2 + $0x280] sm:$0xff]
        %v1073 = vld [vmem:[#allocation2 + $0x288] sm:$0xff]
        %v1074 = vld [vmem:[#allocation2 + $0x290] sm:$0xff]
        %v1075 = vld [vmem:[#allocation2 + $0x298] sm:$0xff]
        %v1076 = vld [vmem:[#allocation2 + $0x2a0] sm:$0xff]
        %v1077 = vld [vmem:[#allocation2 + $0x2a8] sm:$0xff]
        %v1078 = vld [vmem:[#allocation2 + $0x2b0] sm:$0xff]
        %v1079 = vld [vmem:[#allocation2 + $0x2b8] sm:$0xff]
        %v1080 = vld [vmem:[#allocation2 + $0x2c0] sm:$0xff]
        %v1081 = vld [vmem:[#allocation2 + $0x2c8] sm:$0xff]
        %v1082 = vld [vmem:[#allocation2 + $0x2d0] sm:$0xff]
        %v1083 = vld [vmem:[#allocation2 + $0x2d8] sm:$0xff]
        %v1084 = vld [vmem:[#allocation2 + $0x2e0] sm:$0xff]
        %v1085 = vld [vmem:[#allocation2 + $0x2e8] sm:$0xff]
        %v1086 = vld [vmem:[#allocation2 + $0x2f0] sm:$0xff]
        %v1087 = vld [vmem:[#allocation2 + $0x2f8] sm:$0xff]
        %v1088 = vld [vmem:[#allocation2 + $0x300] sm:$0xff]
        %v1089 = vld [vmem:[#allocation2 + $0x308] sm:$0xff]
        %vm1090 = vcmask 64512
        %v1092 = vsel %vm1090, %v987, 0
        %v1095 = vsel %vm1090, %v991, 0
        %1097 = vmatprep.subr.mxu0 %v993
        %1098 = vmatpush1.msra.mxu0 %v992
        %1099 = vmatprep.subr.mxu0 %v995
        %1100 = vmatpush1.msra.mxu0 %v994
        %1101 = vmatprep.subr.mxu0 %v997
        %1102 = vmatpush1.msra.mxu0 %v996
        %1103 = vmatprep.subr.mxu0 %v999
        %1104 = vmatpush1.msra.mxu0 %v998
        %1105 = vmatprep.subr.mxu0 %v1001
        %1106 = vmatpush1.msra.mxu0 %v1000
        %1107 = vmatprep.subr.mxu0 %v1003
        %1108 = vmatpush1.msra.mxu0 %v1002
        %1109 = vmatprep.subr.mxu0 %v1005
        %1110 = vmatpush1.msra.mxu0 %v1004
        %1111 = vmatprep.subr.mxu0 %v1007
        %1112 = vmatpush1.msra.mxu0 %v1006
        %1113 = vmatprep.subr.mxu0 %v1009
        %1114 = vmatpush1.msra.mxu0 %v1008
        %1115 = vmatprep.subr.mxu0 %v1011
        %1116 = vmatpush1.msra.mxu0 %v1010
        %1117 = vmatprep.subr.mxu0 %v1013
        %1118 = vmatpush1.msra.mxu0 %v1012
        %1119 = vmatprep.subr.mxu0 %v1015
        %1120 = vmatpush1.msra.mxu0 %v1014
        %1121 = vmatprep.subr.mxu0 %v1017
        %1122 = vmatpush1.msra.mxu0 %v1016
        %1123 = vmatprep.subr.mxu0 %v1019
        %1124 = vmatpush1.msra.mxu0 %v1018
        %1125 = vmatprep.subr.mxu0 %v1021
        %1126 = vmatpush1.msra.mxu0 %v1020
        %1127 = vmatprep.subr.mxu0 %v1023
        %1128 = vmatpush1.msra.mxu0 %v1022
        %1129 = vmatprep.subr.mxu0 %v1025
        %1130 = vmatpush1.msra.mxu0 %v1024
        %1131 = vmatprep.subr.mxu0 %v1027
        %1132 = vmatpush1.msra.mxu0 %v1026
        %1133 = vmatprep.subr.mxu0 %v1029
        %1134 = vmatpush1.msra.mxu0 %v1028
        %1135 = vmatprep.subr.mxu0 %v1031
        %1136 = vmatpush1.msra.mxu0 %v1030
        %1137 = vmatprep.subr.mxu0 %v1033
        %1138 = vmatpush1.msra.mxu0 %v1032
        %1139 = vmatprep.subr.mxu0 %v1035
        %1140 = vmatpush1.msra.mxu0 %v1034
        %1141 = vmatprep.subr.mxu0 %v1037
        %1142 = vmatpush1.msra.mxu0 %v1036
        %1143 = vmatprep.subr.mxu0 %v1039
        %1144 = vmatpush1.msra.mxu0 %v1038
        %1145 = vmatprep.subr.mxu0 %v1041
        %1146 = vmatpush1.msra.mxu0 %v1040
        %1147 = vmatprep.subr.mxu0 %v1043
        %1148 = vmatpush1.msra.mxu0 %v1042
        %1149 = vmatprep.subr.mxu0 %v1045
        %1150 = vmatpush1.msra.mxu0 %v1044
        %1151 = vmatprep.subr.mxu0 %v1047
        %1152 = vmatpush1.msra.mxu0 %v1046
        %1153 = vmatprep.subr.mxu0 %v1049
        %1154 = vmatpush1.msra.mxu0 %v1048
        %1155 = vmatprep.subr.mxu0 %v1051
        %1156 = vmatpush1.msra.mxu0 %v1050
        %1157 = vmatprep.subr.mxu0 %v1053
        %1158 = vmatpush1.msra.mxu0 %v1052
        %1159 = vmatprep.subr.mxu0 %v1055
        %1160 = vmatpush1.msra.mxu0 %v1054
        %1161 = vmatprep.mubr.f32.mxu0 %v985
        %1162 = vmatmul.mubr.f32.gmra.mrb[0].mxu0 %v984
        %v1163 = vpop.f32.mrb[0].mxu0
        %v1164 = vadd.f32 0.0, %v1163
        %v1165 = vpop.f32.mrb[0].mxu0
        %v1166 = vadd.f32 0.0, %v1165
        %1167 = vmatprep.mubr.f32.mxu0 %v989
        %1168 = vmatmul.mubr.f32.gmra.mrb[0].mxu0 %v988
        %v1169 = vpop.f32.mrb[0].mxu0
        %v1170 = vadd.f32 0.0, %v1169
        %v1171 = vpop.f32.mrb[0].mxu0
        %v1172 = vadd.f32 0.0, %v1171
        %1173 = vdwg.mxu0
        %1174 = vmatprep.subr.mxu0 %v1057
        %1175 = vmatpush1.msra.mxu0 %v1056
        %1176 = vmatprep.subr.mxu0 %v1059
        %1177 = vmatpush1.msra.mxu0 %v1058
        %1178 = vmatprep.subr.mxu0 %v1061
        %1179 = vmatpush1.msra.mxu0 %v1060
        %1180 = vmatprep.subr.mxu0 %v1063
        %1181 = vmatpush1.msra.mxu0 %v1062
        %1182 = vmatprep.subr.mxu0 %v1065
        %1183 = vmatpush1.msra.mxu0 %v1064
        %1184 = vmatprep.subr.mxu0 %v1067
        %1185 = vmatpush1.msra.mxu0 %v1066
        %1186 = vmatprep.subr.mxu0 %v1069
        %1187 = vmatpush1.msra.mxu0 %v1068
        %1188 = vmatprep.subr.mxu0 %v1071
        %1189 = vmatpush1.msra.mxu0 %v1070
        %1190 = vmatprep.subr.mxu0 %v1073
        %1191 = vmatpush1.msra.mxu0 %v1072
        %1192 = vmatprep.subr.mxu0 %v1075
        %1193 = vmatpush1.msra.mxu0 %v1074
        %1194 = vmatprep.subr.mxu0 %v1077
        %1195 = vmatpush1.msra.mxu0 %v1076
        %1196 = vmatprep.subr.mxu0 %v1079
        %1197 = vmatpush1.msra.mxu0 %v1078
        %1198 = vmatprep.subr.mxu0 %v1081
        %1199 = vmatpush1.msra.mxu0 %v1080
        %1200 = vmatprep.subr.mxu0 %v1083
        %1201 = vmatpush1.msra.mxu0 %v1082
        %1202 = vmatprep.subr.mxu0 %v1085
        %1203 = vmatpush1.msra.mxu0 %v1084
        %1204 = vmatprep.subr.mxu0 %v1087
        %1205 = vmatpush1.msra.mxu0 %v1086
        %1206 = vmatprep.subr.mxu0 %v1089
        %1207 = vmatpush1.msra.mxu0 %v1088
        %1208 = vmatprep.subr.mxu0 0.0
        %1209 = vmatpush1.msra.mxu0 0.0
        %1210 = vmatprep.subr.mxu0 0.0
        %1211 = vmatpush1.msra.mxu0 0.0
        %1212 = vmatprep.subr.mxu0 0.0
        %1213 = vmatpush1.msra.mxu0 0.0
        %1214 = vmatprep.subr.mxu0 0.0
        %1215 = vmatpush1.msra.mxu0 0.0
        %1216 = vmatprep.subr.mxu0 0.0
        %1217 = vmatpush1.msra.mxu0 0.0
        %1218 = vmatprep.subr.mxu0 0.0
        %1219 = vmatpush1.msra.mxu0 0.0
        %1220 = vmatprep.subr.mxu0 0.0
        %1221 = vmatpush1.msra.mxu0 0.0
        %1222 = vmatprep.subr.mxu0 0.0
        %1223 = vmatpush1.msra.mxu0 0.0
        %1224 = vmatprep.subr.mxu0 0.0
        %1225 = vmatpush1.msra.mxu0 0.0
        %1226 = vmatprep.subr.mxu0 0.0
        %1227 = vmatpush1.msra.mxu0 0.0
        %1228 = vmatprep.subr.mxu0 0.0
        %1229 = vmatpush1.msra.mxu0 0.0
        %1230 = vmatprep.subr.mxu0 0.0
        %1231 = vmatpush1.msra.mxu0 0.0
        %1232 = vmatprep.subr.mxu0 0.0
        %1233 = vmatpush1.msra.mxu0 0.0
        %1234 = vmatprep.subr.mxu0 0.0
        %1235 = vmatpush1.msra.mxu0 0.0
        %1236 = vmatprep.subr.mxu0 0.0
        %1237 = vmatpush1.msra.mxu0 0.0
        %1238 = vmatprep.mubr.f32.mxu0 %v1092
        %1239 = vmatmul.mubr.f32.gmra.mrb[0].mxu0 %v986
        %v1240 = vpop.f32.mrb[0].mxu0
        %v1241 = vadd.f32 %v1164, %v1240
        %v1242 = vpop.f32.mrb[0].mxu0
        %v1243 = vadd.f32 %v1166, %v1242
        %1244 = vmatprep.mubr.f32.mxu0 %v1095
        %1245 = vmatmul.mubr.f32.gmra.mrb[0].mxu0 %v990
        %v1246 = vpop.f32.mrb[0].mxu0
        %v1247 = vadd.f32 %v1170, %v1246
        %v1248 = vpop.f32.mrb[0].mxu0
        %v1249 = vadd.f32 %v1172, %v1248
        %1250 = vdwg.mxu0
        %v1251 = vld [vmem:[%s150 + $0x8] sm:$0xff]
        %v1252 = vld [vmem:[%s150 + $0x10] sm:$0xff]
        %v1253 = vxor.u32 %v1241, 2147483648
        %v1254 = vxor.u32 %v1243, 2147483648
        %v1255 = vmul.f32 %v1253, 1.442695
        %v1256 = vpow.pop %v1255
        %v1257 = vmul.f32 %v1254, 1.442695
        %v1258 = vpow.pop %v1257
        %v1259 = vadd.f32 %v1256, 1.0
        %v1260 = vadd.f32 %v1258, 1.0
        %v1261 = vrcp.pop %v1259
        %v1262 = vmul.f32 1.0, %v1261
        %v1263 = vrcp.pop %v1260
        %v1264 = vmul.f32 1.0, %v1263
        %v1265 = vxor.u32 %v1247, 2147483648
        %v1266 = vxor.u32 %v1249, 2147483648
        %v1267 = vmul.f32 %v1265, 1.442695
        %v1268 = vpow.pop %v1267
        %v1269 = vmul.f32 %v1266, 1.442695
        %v1270 = vpow.pop %v1269
        %v1271 = vadd.f32 %v1268, 1.0
        %v1272 = vadd.f32 %v1270, 1.0
        %v1273 = vrcp.pop %v1271
        %v1274 = vmul.f32 1.0, %v1273
        %v1275 = vrcp.pop %v1272
        %v1276 = vmul.f32 1.0, %v1275
        %v1277 = vmul.f32 %v1262, %v1274
        %v1278 = vmul.f32 %v1264, %v1276
        %v1279 = vmul.f32 %v1251, %v1277
        %v1280 = vmul.f32 %v1252, %v1278
        %1281 = vst [vmem:[%s174] sm:$0xff] %v1279
        %1282 = vst [vmem:[%s174 + $0x8] sm:$0xff] %v1280
        %s1283 = sand.u32 %s75, 1
        %s1284 = scalar_lea.sflag [#allocation5], %s1283
        %s1285 = sand.u32 %s75, 1
        %s1286 = smul.addr %s1285, 16
        %s1287 = scalar_lea.vmem [#allocation8], %s1286
        // Predicated region
        $region37: #{tpu_custom_call.1} parent=27 // pred_check
          %p1288 = pneg %p85
        $region38: #{tpu_custom_call.1} parent=27 // pred_check_branch
          %1290 = sbr.rel (%p1288) target = $region40
        $region39: #{tpu_custom_call.1} parent=27 // pred_region
          %s1292 = ssub.s32 256, 256
          %1293 = vsyncadd %s1284, %s1292
          %s1294 = smul.addr %s20, 2
          %s1295 = smul.addr %s1294, 128
          %s1296 = scalar_lea.hbm %s2, %s1295
          %s1298 = sshll.u32 %s1287, 4
          %s1299 = int_to_ptr.vmem [resolvable:$true] %s1298
          %1301 = dma.vmem_to_hbm [thread:$0]  %s1299, 256, %s1296, %s1284
        $region40: #{tpu_custom_call.1} parent=27 // pred_fallthru
          _
      $region28: #{tpu_custom_call.1} parent=5 // pred_fallthru
        _
      %p1302 = scmp.le.s32.totalorder 2, %s15
      // Predicated region
      $region41: #{tpu_custom_call.1} parent=5 // pred_check
        %p1303 = pneg %p1302
      $region42: #{tpu_custom_call.1} parent=5 // pred_check_branch
        %1305 = sbr.rel (%p1303) target = $region44
      $region43: #{tpu_custom_call.1} parent=5 // pred_region
        %s1306 = ssub.s32 %s15, 2
        // Predicated region
        $region45: #{tpu_custom_call.1} parent=43 // pred_check
          %p1307 = pneg %p91
        $region46: #{tpu_custom_call.1} parent=43 // pred_check_branch
          %1309 = sbr.rel (%p1307) target = $region48
        $region47: #{tpu_custom_call.1} parent=43 // pred_region
          %s1310 = sand.u32 %s76, 1
          %s1311 = scalar_lea.sflag [#allocation5], %s1310
          %s1312 = sand.u32 %s76, 1
          %s1313 = smul.addr %s1312, 16
          %s1314 = scalar_lea.vmem [#allocation8], %s1313
          %1315 = dma.done %s1311, 256
        $region48: #{tpu_custom_call.1} parent=43 // pred_fallthru
          _
      $region44: #{tpu_custom_call.1} parent=5 // pred_fallthru
        _
    $region6: #{tpu_custom_call.1} parent=1 // loop_footer
      %s19 = sadd.s32 1, %s15
    $region7: #{tpu_custom_call.1} parent=1 // loop_footer_branch
      %14 = sbr.rel target = $region3
    $region8: #{tpu_custom_call.1} parent=1 // loop_exit
      _
    %1316 = vsyncpa [#allocation4], 1
    %s1317 = scalar_lea.sflag [#allocation4], 1
    %1318 = vsyncpa %s1317, 1
    %1319 = vsyncpa [#allocation7], 1
    %1320 = vsyncpa [#allocation5], 1
    %s1321 = scalar_lea.sflag [#allocation5], 1
    %1322 = vsyncpa %s1321, 1

</llo_original>
